<compile_context>
chip_gen: v7x
topology: tpu7x:2x2x1
jax: 0.10.0
libtpu: 0.0.40
codegen_flags: <defaults>
</compile_context>

<pallas_src>
from typing import NamedTuple

import jax
import jax.numpy as jnp
from jax.experimental import pallas as pl
from jax.experimental.pallas import tpu as pltpu


def _round_up(x: int, m: int) -> int:
    return (x + m - 1) // m * m


# --------------------------------------------------------------------------
# Hardware / VMEM budgeting
# --------------------------------------------------------------------------

def _vmem_capacity_bytes() -> int:
    try:
        return int(pltpu.get_tpu_info().vmem_capacity_bytes)
    except Exception:
        pass
    try:
        kind = jax.devices()[0].device_kind.lower()
        if "v7" in kind:
            return 64 * (1 << 20)
    except Exception:
        pass
    return 128 * (1 << 20)


def _vmem_limit_bytes(capacity: int) -> int:
    # ~100 MiB on 128-MiB parts (v5e/v6e), ~56 MiB on 64-MiB parts (v7x);
    # leaves headroom for compiler-internal scratch.
    return min(100 * (1 << 20), capacity - 8 * (1 << 20))


def _supports_single_buffer() -> bool:
    return hasattr(pl, "Buffered")


def _resident_spec(block_shape, single_buffer):
    """BlockSpec for a grid-invariant operand (constant index_map)."""
    index_map = lambda *_: (0,) * len(block_shape)
    if single_buffer and _supports_single_buffer():
        return pl.BlockSpec(block_shape, index_map, pipeline_mode=pl.Buffered(1))
    return pl.BlockSpec(block_shape, index_map)


def _pick_batch_tile(B: int, block_b: int) -> int:
    tb = min(block_b, _round_up(B, 8))
    if B >= 256 and block_b >= 256:
        # Keep the 256-wide MXU M dimension fully fed on v6e/v7x.
        tb = max(256, (tb // 256) * 256)
    return tb


def _pick_hidden_tile(in_p, hid_p, out_p, tb, w_item, x_item, o_item, budget):
    """Largest multiple-of-128 divisor of hid_p whose double-buffered weight
    tiles + activations fit in `budget` bytes."""
    m = hid_p // 128
    best = 128
    for blocks in range(1, m + 1):
        if m % blocks:
            continue
        bh = blocks * 128
        w_tiles = 2 * (in_p * bh + bh * out_p) * w_item          # double-buffered
        act = (2 * tb * in_p * x_item + 2 * tb * out_p * o_item
               + tb * bh * 4 + tb * out_p * 4 + (bh + out_p) * 8)
        if w_tiles + act <= budget:
            best = bh
    return best


# --------------------------------------------------------------------------
# Kernels
# --------------------------------------------------------------------------

def _mlp_fused_kernel(x_ref, w1_ref, b1_ref, w2_ref, b2_ref, o_ref):
    # fc1 -> bias+ReLU fused on the f32 accumulator.
    h = jnp.dot(x_ref[...], w1_ref[...], preferred_element_type=jnp.float32)
    h = jnp.maximum(h + b1_ref[...], 0.0)                  # b1 [1, hid] broadcasts
    # fc2 -> bias+ReLU fused on the f32 accumulator.
    y = jnp.dot(h.astype(w2_ref.dtype), w2_ref[...],
                preferred_element_type=jnp.float32)
    o_ref[...] = jnp.maximum(y + b2_ref[...], 0.0).astype(o_ref.dtype)


def _mlp_hidden_tiled_kernel(x_ref, w1_ref, b1_ref, w2_ref, b2_ref, o_ref, acc_ref):
    # fc1 N-tiled / fc2 K-tiled over the hidden dim (grid axis 1, "arbitrary").
    k = pl.program_id(1)

    @pl.when(k == 0)
    def _():
        acc_ref[...] = jnp.zeros_like(acc_ref)

    h = jnp.dot(x_ref[...], w1_ref[...], preferred_element_type=jnp.float32)
    h = jnp.maximum(h + b1_ref[...], 0.0)                  # ReLU per hidden tile is exact
    acc_ref[...] += jnp.dot(h.astype(w2_ref.dtype), w2_ref[...],
                            preferred_element_type=jnp.float32)

    @pl.when(k == pl.num_programs(1) - 1)
    def _():
        o_ref[...] = jnp.maximum(acc_ref[...] + b2_ref[...], 0.0).astype(o_ref.dtype)


# --------------------------------------------------------------------------
# Parameter preparation (once, outside the per-call path)
# --------------------------------------------------------------------------

class PreparedParams(NamedTuple):
    w1p: jax.Array    # [in_p, hid_p]
    b1p: jax.Array    # [1, hid_p] f32
    w2p: jax.Array    # [hid_p, out_p]
    b2p: jax.Array    # [1, out_p] f32
    in_dim: int
    hidden: int
    out_dim: int


def prepare_params(w1, b1, w2, b2, *, param_dtype=None) -> PreparedParams:
    """Pad (and optionally cast) the MLP parameters once.
    w1: [in_dim, hidden] (== fc1.weight.T), w2: [hidden, out_dim] (== fc2.weight.T)."""
    in_dim, hidden = w1.shape
    out_dim = w2.shape[1]
    in_p, hid_p, out_p = (_round_up(in_dim, 128), _round_up(hidden, 128),
                          _round_up(out_dim, 128))
    wdt = jnp.dtype(param_dtype) if param_dtype is not None else w1.dtype
    w1p = jnp.zeros((in_p, hid_p), wdt).at[:in_dim, :hidden].set(w1.astype(wdt))
    w2p = jnp.zeros((hid_p, out_p), wdt).at[:hidden, :out_dim].set(w2.astype(wdt))
    b1p = jnp.zeros((1, hid_p), jnp.float32).at[:, :hidden].set(
        b1.reshape(1, -1).astype(jnp.float32))
    b2p = jnp.zeros((1, out_p), jnp.float32).at[:, :out_dim].set(
        b2.reshape(1, -1).astype(jnp.float32))
    return PreparedParams(w1p, b1p, w2p, b2p, in_dim, hidden, out_dim)


# --------------------------------------------------------------------------
# Forward
# --------------------------------------------------------------------------

def basic_mlp_forward_prepared(x, params: PreparedParams, *, block_b: int = 512,
                               block_h=None, matmul_dtype=None):
    """x: [B, in_dim] -> [B, out_dim]."""
    B, in_dim = x.shape
    assert in_dim == params.in_dim, "input feature dim mismatch"
    orig_dtype = x.dtype
    compute_dtype = (jnp.dtype(matmul_dtype) if matmul_dtype is not None
                     else jnp.dtype(x.dtype))

    w1p, b1p, w2p, b2p = params.w1p, params.b1p, params.w2p, params.b2p
    if matmul_dtype is not None:
        w1p = w1p.astype(compute_dtype)
        w2p = w2p.astype(compute_dtype)

    in_p, hid_p = w1p.shape
    out_p = w2p.shape[1]

    tb = _pick_batch_tile(B, block_b)
    b_p = _round_up(B, tb)

    # Skip the extra HBM pass over x when the call is already aligned.
    if b_p == B and in_p == in_dim and jnp.dtype(x.dtype) == compute_dtype:
        xp = x
    else:
        xp = jnp.zeros((b_p, in_p), compute_dtype).at[:B, :in_dim].set(
            x.astype(compute_dtype))

    capacity = _vmem_capacity_bytes()
    vmem_limit = _vmem_limit_bytes(capacity)
    budget = int(0.75 * vmem_limit)

    w_item = jnp.dtype(w1p.dtype).itemsize
    x_item = jnp.dtype(xp.dtype).itemsize
    o_item = jnp.dtype(orig_dtype).itemsize

    resident_w_bytes = (in_p * hid_p + hid_p * out_p) * w_item + (hid_p + out_p) * 4
    act_bytes = (2 * tb * in_p * x_item + 2 * tb * out_p * o_item
                 + tb * hid_p * 4 + tb * out_p * 4)
    use_tiled = (block_h is not None) or (resident_w_bytes + act_bytes > budget)

    if use_tiled:
        if block_h is None:
            block_h = _pick_hidden_tile(in_p, hid_p, out_p, tb,
                                        w_item, x_item, o_item, budget)
        block_h = max(128, _round_up(int(block_h), 128))
        hid_t = _round_up(hid_p, block_h)
        if hid_t != hid_p:                       # re-pad hidden to a block_h multiple
            w1p = jnp.zeros((in_p, hid_t), w1p.dtype).at[:, :hid_p].set(w1p)
            b1p = jnp.zeros((1, hid_t), jnp.float32).at[:, :hid_p].set(b1p)
            w2p = jnp.zeros((hid_t, out_p), w2p.dtype).at[:hid_p, :].set(w2p)
            hid_p = hid_t

    cost = pl.CostEstimate(
        flops=2 * B * (in_p * hid_p + hid_p * out_p),
        transcendentals=0,
        bytes_accessed=int(B * in_p * x_item
                           + w1p.size * w_item + w2p.size * w_item
                           + (b1p.size + b2p.size) * 4
                           + B * out_p * o_item),
    )

    compiler_params = pltpu.CompilerParams(
        dimension_semantics=(("parallel", "arbitrary") if use_tiled
                             else ("parallel",)),
        vmem_limit_bytes=int(vmem_limit),
    )

    def _launch(single_buffer: bool):
        if use_tiled:
            grid = (b_p // tb, hid_p // block_h)
            in_specs = [
                pl.BlockSpec((tb, in_p), lambda i, k: (i, 0)),        # x (held across k)
                pl.BlockSpec((in_p, block_h), lambda i, k: (0, k)),   # w1 N-tile
                pl.BlockSpec((1, block_h), lambda i, k: (0, k)),      # b1 tile
                pl.BlockSpec((block_h, out_p), lambda i, k: (k, 0)),  # w2 K-tile
                _resident_spec((1, out_p), single_buffer),            # b2 resident
            ]
            out_spec = pl.BlockSpec((tb, out_p), lambda i, k: (i, 0))
            scratch = [pltpu.VMEM((tb, out_p), jnp.float32)]
            kernel = _mlp_hidden_tiled_kernel
        else:
            grid = (b_p // tb,)
            in_specs = [
                pl.BlockSpec((tb, in_p), lambda i: (i, 0)),           # x streamed per tile
                _resident_spec((in_p, hid_p), single_buffer),         # w1 resident
                _resident_spec((1, hid_p), single_buffer),            # b1 resident
                _resident_spec((hid_p, out_p), single_buffer),        # w2 resident
                _resident_spec((1, out_p), single_buffer),            # b2 resident
            ]
            out_spec = pl.BlockSpec((tb, out_p), lambda i: (i, 0))
            scratch = []
            kernel = _mlp_fused_kernel

        return pl.pallas_call(
            kernel,
            out_shape=jax.ShapeDtypeStruct((b_p, out_p), orig_dtype),
            grid=grid,
            in_specs=in_specs,
            out_specs=out_spec,
            scratch_shapes=scratch,
            compiler_params=compiler_params,
            cost_estimate=cost,
        )(xp, w1p, b1p, w2p, b2p)

    try:
        out_padded = _launch(single_buffer=True)
    except Exception:
        # Fallback for builds that reject pipeline_mode=pl.Buffered(1) on
        # grid-invariant operands: default double-buffering (still correct).
        out_padded = _launch(single_buffer=False)

    if b_p == B and out_p == params.out_dim:
        return out_padded
    return out_padded[:B, :params.out_dim]


def basic_mlp_forward(x, w1, b1, w2, b2, *, block_b: int = 512, block_h=None,
                      matmul_dtype=None):
    """Convenience wrapper: prepares (pads/casts) parameters then runs the kernel.
    For repeated inference, call prepare_params once and use
    basic_mlp_forward_prepared to avoid the per-call padding pass."""
    params = prepare_params(w1, b1, w2, b2, param_dtype=matmul_dtype)
    return basic_mlp_forward_prepared(x, params, block_b=block_b,
                                      block_h=block_h, matmul_dtype=matmul_dtype)


def reference_mlp(x, w1, b1, w2, b2):
    h = jnp.maximum(x @ w1 + b1.reshape(1, -1), 0.0)
    return jnp.maximum(h @ w2 + b2.reshape(1, -1), 0.0)


# --------------------------------------------------------------------------
# Demo / self-test
# --------------------------------------------------------------------------

if __name__ == "__main__":
    def make(in_dim, hidden, out_dim, batch, key):
        kx, kw1, kb1, kw2, kb2 = jax.random.split(key, 5)
        x = jax.random.normal(kx, (batch, in_dim), jnp.float32)
        lim1 = 1.0 / (in_dim ** 0.5)
        lim2 = 1.0 / (hidden ** 0.5)
        w1 = jax.random.uniform(kw1, (in_dim, hidden), jnp.float32, -lim1, lim1)
        b1 = jax.random.uniform(kb1, (hidden,), jnp.float32, -lim1, lim1)
        w2 = jax.random.uniform(kw2, (hidden, out_dim), jnp.float32, -lim2, lim2)
        b2 = jax.random.uniform(kb2, (out_dim,), jnp.float32, -lim2, lim2)
        return x, w1, b1, w2, b2

    key = jax.random.PRNGKey(0)
    k1, k2 = jax.random.split(key)

    # --- Test 1: small BasicMLP shapes, fused weight-resident path, f32.
    x, w1, b1, w2, b2 = make(16, 32, 8, 64, k1)
    out = jax.block_until_ready(basic_mlp_forward(x, w1, b1, w2, b2, block_b=32))
    ref = reference_mlp(x, w1, b1, w2, b2)
    assert out.shape == (64, 8)
    assert jnp.allclose(out, ref, atol=1e-5, rtol=1e-5)

    # --- Test 2: force the hidden-dim tiled fallback (v7x path), ragged batch.
    x2, w1b, b1b, w2b, b2b = make(48, 300, 72, 136, k2)
    out2 = jax.block_until_ready(
        basic_mlp_forward(x2, w1b, b1b, w2b, b2b, block_b=64, block_h=128))
    ref2 = reference_mlp(x2, w1b, b1b, w2b, b2b)
    assert out2.shape == (136, 72)
    assert jnp.allclose(out2, ref2, atol=2e-3, rtol=2e-3)

    # --- Test 3: bf16 matmul operands (v5e-friendly), f32 epilogue/output.
    params_bf16 = prepare_params(w1, b1, w2, b2, param_dtype=jnp.bfloat16)
    out3 = jax.block_until_ready(
        basic_mlp_forward_prepared(x, params_bf16, block_b=32,
                                   matmul_dtype=jnp.bfloat16))
    assert out3.shape == (64, 8) and out3.dtype == x.dtype
    assert jnp.allclose(out3, ref, atol=0.1, rtol=0.1)

    print("KERNEL_OK")
</pallas_src>

<mosaic_0001>
module attributes {stable_mosaic.version = 11 : i64} {
  func.func @_mlp_fused_kernel(%arg0: i32, %arg1: memref<32x128xf32, #tpu.memory_space<vmem>>, %arg2: memref<128x128xf32, #tpu.memory_space<vmem>>, %arg3: memref<1x128xf32, #tpu.memory_space<vmem>>, %arg4: memref<128x128xf32, #tpu.memory_space<vmem>>, %arg5: memref<1x128xf32, #tpu.memory_space<vmem>>, %arg6: memref<32x128xf32, #tpu.memory_space<vmem>>) attributes {dimension_semantics = [#tpu.dimension_semantics<parallel>], iteration_bounds = array<i64: 2>, scalar_prefetch = 0 : i64, scratch_operands = 0 : i64, tpu.core_type = #tpu.core_type<tc>, window_params = [{transform_indices = @transform_0, window_bounds = array<i64: 32, 128>}, {pipeline_mode = #tpu.pipeline_mode<synchronous>, transform_indices = @transform_1, window_bounds = array<i64: 128, 128>}, {pipeline_mode = #tpu.pipeline_mode<synchronous>, transform_indices = @transform_2, window_bounds = array<i64: 1, 128>}, {pipeline_mode = #tpu.pipeline_mode<synchronous>, transform_indices = @transform_3, window_bounds = array<i64: 128, 128>}, {pipeline_mode = #tpu.pipeline_mode<synchronous>, transform_indices = @transform_4, window_bounds = array<i64: 1, 128>}, {transform_indices = @transform_5, window_bounds = array<i64: 32, 128>}]} {
    %c0 = arith.constant 0 : index
    %c0_0 = arith.constant 0 : index
    %0 = vector.load %arg1[%c0, %c0_0] : memref<32x128xf32, #tpu.memory_space<vmem>>, vector<32x128xf32>
    %c0_1 = arith.constant 0 : index
    %c0_2 = arith.constant 0 : index
    %1 = vector.load %arg2[%c0_1, %c0_2] : memref<128x128xf32, #tpu.memory_space<vmem>>, vector<128x128xf32>
    %cst = arith.constant dense<0.000000e+00> : vector<32x128xf32>
    %2 = tpu.matmul %0, %1, %cst {dimension_numbers = #tpu.dot_dimension_numbers<[1], [0], [0], [1], [0, 0, 1, 1], [], []>} : vector<32x128xf32>, vector<128x128xf32>, vector<32x128xf32> -> vector<32x128xf32>
    %c0_3 = arith.constant 0 : index
    %c0_4 = arith.constant 0 : index
    %3 = vector.load %arg3[%c0_3, %c0_4] : memref<1x128xf32, #tpu.memory_space<vmem>>, vector<1x128xf32>
    %4 = vector.broadcast %3 : vector<1x128xf32> to vector<32x128xf32>
    %5 = arith.addf %2, %4 : vector<32x128xf32>
    %cst_5 = arith.constant 0.000000e+00 : f32
    %6 = vector.broadcast %cst_5 : f32 to vector<32x128xf32>
    %7 = arith.maximumf %5, %6 : vector<32x128xf32>
    %c0_6 = arith.constant 0 : index
    %c0_7 = arith.constant 0 : index
    %8 = vector.load %arg4[%c0_6, %c0_7] : memref<128x128xf32, #tpu.memory_space<vmem>>, vector<128x128xf32>
    %cst_8 = arith.constant dense<0.000000e+00> : vector<32x128xf32>
    %9 = tpu.matmul %7, %8, %cst_8 {dimension_numbers = #tpu.dot_dimension_numbers<[1], [0], [0], [1], [0, 0, 1, 1], [], []>} : vector<32x128xf32>, vector<128x128xf32>, vector<32x128xf32> -> vector<32x128xf32>
    %c0_9 = arith.constant 0 : index
    %c0_10 = arith.constant 0 : index
    %10 = vector.load %arg5[%c0_9, %c0_10] : memref<1x128xf32, #tpu.memory_space<vmem>>, vector<1x128xf32>
    %11 = vector.broadcast %10 : vector<1x128xf32> to vector<32x128xf32>
    %12 = arith.addf %9, %11 : vector<32x128xf32>
    %cst_11 = arith.constant 0.000000e+00 : f32
    %13 = vector.broadcast %cst_11 : f32 to vector<32x128xf32>
    %14 = arith.maximumf %12, %13 : vector<32x128xf32>
    %c0_12 = arith.constant 0 : index
    %c0_13 = arith.constant 0 : index
    %15 = vector.load %arg6[%c0_12, %c0_13] : memref<32x128xf32, #tpu.memory_space<vmem>>, vector<32x128xf32>
    tpu.vector_store %arg6[%c0_12, %c0_13], %14 {strides = array<i32>} : memref<32x128xf32, #tpu.memory_space<vmem>>, vector<32x128xf32>,
    return
  }
  func.func @transform_0(%arg0: i32) -> (i32, i32) {
    %c0_i32 = arith.constant 0 : i32
    %c0_i32_0 = arith.constant 0 : i32
    return %arg0, %c0_i32 : i32, i32
  }
  func.func @transform_1(%arg0: i32) -> (i32, i32) {
    %c0_i32 = arith.constant 0 : i32
    %c0_i32_0 = arith.constant 0 : i32
    %c0_i32_1 = arith.constant 0 : i32
    return %c0_i32, %c0_i32_0 : i32, i32
  }
  func.func @transform_2(%arg0: i32) -> (i32, i32) {
    %c0_i32 = arith.constant 0 : i32
    %c0_i32_0 = arith.constant 0 : i32
    %c0_i32_1 = arith.constant 0 : i32
    return %c0_i32, %c0_i32_0 : i32, i32
  }
  func.func @transform_3(%arg0: i32) -> (i32, i32) {
    %c0_i32 = arith.constant 0 : i32
    %c0_i32_0 = arith.constant 0 : i32
    %c0_i32_1 = arith.constant 0 : i32
    return %c0_i32, %c0_i32_0 : i32, i32
  }
  func.func @transform_4(%arg0: i32) -> (i32, i32) {
    %c0_i32 = arith.constant 0 : i32
    %c0_i32_0 = arith.constant 0 : i32
    %c0_i32_1 = arith.constant 0 : i32
    return %c0_i32, %c0_i32_0 : i32, i32
  }
  func.func @transform_5(%arg0: i32) -> (i32, i32) {
    %c0_i32 = arith.constant 0 : i32
    %c0_i32_0 = arith.constant 0 : i32
    return %arg0, %c0_i32 : i32, i32
  }
}

module attributes {stable_mosaic.version = 11 : i64} {
  func.func @_mlp_fused_kernel(%arg0: i32, %arg1: memref<32x128xf32, #tpu.memory_space<vmem>>, %arg2: memref<128x128xf32, #tpu.memory_space<vmem>>, %arg3: memref<1x128xf32, #tpu.memory_space<vmem>>, %arg4: memref<128x128xf32, #tpu.memory_space<vmem>>, %arg5: memref<1x128xf32, #tpu.memory_space<vmem>>, %arg6: memref<32x128xf32, #tpu.memory_space<vmem>>) attributes {dimension_semantics = [#tpu.dimension_semantics<parallel>], iteration_bounds = array<i64: 2>, scalar_prefetch = 0 : i64, scratch_operands = 0 : i64, tpu.core_type = #tpu.core_type<tc>, window_params = [{transform_indices = @transform_0, window_bounds = array<i64: 32, 128>}, {pipeline_mode = #tpu.pipeline_mode<synchronous>, transform_indices = @transform_1, window_bounds = array<i64: 128, 128>}, {pipeline_mode = #tpu.pipeline_mode<synchronous>, transform_indices = @transform_2, window_bounds = array<i64: 1, 128>}, {pipeline_mode = #tpu.pipeline_mode<synchronous>, transform_indices = @transform_3, window_bounds = array<i64: 128, 128>}, {pipeline_mode = #tpu.pipeline_mode<synchronous>, transform_indices = @transform_4, window_bounds = array<i64: 1, 128>}, {transform_indices = @transform_5, window_bounds = array<i64: 32, 128>}]} {
    %c0 = arith.constant 0 : index
    %c0_0 = arith.constant 0 : index
    %0 = vector.load %arg1[%c0, %c0_0] : memref<32x128xf32, #tpu.memory_space<vmem>>, vector<32x128xf32>
    %c0_1 = arith.constant 0 : index
    %c0_2 = arith.constant 0 : index
    %1 = vector.load %arg2[%c0_1, %c0_2] : memref<128x128xf32, #tpu.memory_space<vmem>>, vector<128x128xf32>
    %cst = arith.constant dense<0.000000e+00> : vector<32x128xf32>
    %2 = tpu.matmul %0, %1, %cst {dimension_numbers = #tpu.dot_dimension_numbers<[1], [0], [0], [1], [0, 0, 1, 1], [], []>} : vector<32x128xf32>, vector<128x128xf32>, vector<32x128xf32> -> vector<32x128xf32>
    %c0_3 = arith.constant 0 : index
    %c0_4 = arith.constant 0 : index
    %3 = vector.load %arg3[%c0_3, %c0_4] : memref<1x128xf32, #tpu.memory_space<vmem>>, vector<1x128xf32>
    %4 = vector.broadcast %3 : vector<1x128xf32> to vector<32x128xf32>
    %5 = arith.addf %2, %4 : vector<32x128xf32>
    %cst_5 = arith.constant 0.000000e+00 : f32
    %6 = vector.broadcast %cst_5 : f32 to vector<32x128xf32>
    %7 = arith.maximumf %5, %6 : vector<32x128xf32>
    %c0_6 = arith.constant 0 : index
    %c0_7 = arith.constant 0 : index
    %8 = vector.load %arg4[%c0_6, %c0_7] : memref<128x128xf32, #tpu.memory_space<vmem>>, vector<128x128xf32>
    %cst_8 = arith.constant dense<0.000000e+00> : vector<32x128xf32>
    %9 = tpu.matmul %7, %8, %cst_8 {dimension_numbers = #tpu.dot_dimension_numbers<[1], [0], [0], [1], [0, 0, 1, 1], [], []>} : vector<32x128xf32>, vector<128x128xf32>, vector<32x128xf32> -> vector<32x128xf32>
    %c0_9 = arith.constant 0 : index
    %c0_10 = arith.constant 0 : index
    %10 = vector.load %arg5[%c0_9, %c0_10] : memref<1x128xf32, #tpu.memory_space<vmem>>, vector<1x128xf32>
    %11 = vector.broadcast %10 : vector<1x128xf32> to vector<32x128xf32>
    %12 = arith.addf %9, %11 : vector<32x128xf32>
    %cst_11 = arith.constant 0.000000e+00 : f32
    %13 = vector.broadcast %cst_11 : f32 to vector<32x128xf32>
    %14 = arith.maximumf %12, %13 : vector<32x128xf32>
    %c0_12 = arith.constant 0 : index
    %c0_13 = arith.constant 0 : index
    %15 = vector.load %arg6[%c0_12, %c0_13] : memref<32x128xf32, #tpu.memory_space<vmem>>, vector<32x128xf32>
    tpu.vector_store %arg6[%c0_12, %c0_13], %14 {strides = array<i32>} : memref<32x128xf32, #tpu.memory_space<vmem>>, vector<32x128xf32>,
    return
  }
  func.func @transform_0(%arg0: i32) -> (i32, i32) {
    %c0_i32 = arith.constant 0 : i32
    %c0_i32_0 = arith.constant 0 : i32
    return %arg0, %c0_i32 : i32, i32
  }
  func.func @transform_1(%arg0: i32) -> (i32, i32) {
    %c0_i32 = arith.constant 0 : i32
    %c0_i32_0 = arith.constant 0 : i32
    %c0_i32_1 = arith.constant 0 : i32
    return %c0_i32, %c0_i32_0 : i32, i32
  }
  func.func @transform_2(%arg0: i32) -> (i32, i32) {
    %c0_i32 = arith.constant 0 : i32
    %c0_i32_0 = arith.constant 0 : i32
    %c0_i32_1 = arith.constant 0 : i32
    return %c0_i32, %c0_i32_0 : i32, i32
  }
  func.func @transform_3(%arg0: i32) -> (i32, i32) {
    %c0_i32 = arith.constant 0 : i32
    %c0_i32_0 = arith.constant 0 : i32
    %c0_i32_1 = arith.constant 0 : i32
    return %c0_i32, %c0_i32_0 : i32, i32
  }
  func.func @transform_4(%arg0: i32) -> (i32, i32) {
    %c0_i32 = arith.constant 0 : i32
    %c0_i32_0 = arith.constant 0 : i32
    %c0_i32_1 = arith.constant 0 : i32
    return %c0_i32, %c0_i32_0 : i32, i32
  }
  func.func @transform_5(%arg0: i32) -> (i32, i32) {
    %c0_i32 = arith.constant 0 : i32
    %c0_i32_0 = arith.constant 0 : i32
    return %arg0, %c0_i32 : i32, i32
  }
}

</mosaic_0001>

<llo_original>
// kernel: tpu_custom_call.1
$region0: #{tpu_custom_call.1}
  #allocation0 [shape = 'u32[]', space=smem, size = 0x4, offset = 0x4, fixed_abs, tag = 'smem constant byte address 0x4 - core index']
  #allocation1 [shape = 'u32[144,128]{1,0:T(1,128)}', space=vmem, size = 0x12000, scoped, tag = 'internal scratch']
  %s0 = inlined_call_operand.hbm [shape: f32[64,128], index: 0, kind: input, shape index: {}]
  %s1 = inlined_call_operand.hbm [shape: f32[128,128], index: 1, kind: input, shape index: {}]
  %s2 = inlined_call_operand.hbm [shape: f32[1,128], index: 2, kind: input, shape index: {}]
  %s3 = inlined_call_operand.hbm [shape: f32[128,128], index: 3, kind: input, shape index: {}]
  %s4 = inlined_call_operand.hbm [shape: f32[1,128], index: 4, kind: input, shape index: {}]
  %s5 = inlined_call_operand.hbm [shape: f32[64,128], index: 5, kind: output, shape index: {}]
  %s6 = sld [smem:[#allocation0]]
  $region73: #{tpu_custom_call.1} parent=0
    _
  %s8 = ssub.s32 1, %s6
  %s9 = scalar_select 0, %s8, %s6
  $region1: #{tpu_custom_call.1} parent=0
    #allocation2 [shape = 'u8[32768]{0}', space=vmem, size = 0x8000, scoped, tag = 'input window, operand 0']
    #allocation3 [shape = 's32[2]{0}', space=sflag, size = 0x8, scoped, tag = 'scoped memory for tpu_custom_call.1']
    #allocation4 [shape = 's32[2]{0}', space=sflag, size = 0x8, scoped, tag = 'scoped memory for tpu_custom_call.1']
    #allocation5 [shape = 'u8[65536]{0}', space=vmem, size = 0x10000, scoped, tag = 'input window, operand 1, single buffered']
    #allocation6 [shape = 's32[1]{0}', space=sflag, size = 0x4, scoped, tag = 'scoped memory for tpu_custom_call.1']
    #allocation7 [shape = 'u8[512]{0}', space=vmem, size = 0x400, scoped, tag = 'input window, operand 2, single buffered']
    #allocation8 [shape = 'u8[65536]{0}', space=vmem, size = 0x10000, scoped, tag = 'input window, operand 3, single buffered']
    #allocation9 [shape = 's32[1]{0}', space=sflag, size = 0x4, scoped, tag = 'scoped memory for tpu_custom_call.1']
    #allocation10 [shape = 'u8[512]{0}', space=vmem, size = 0x400, scoped, tag = 'input window, operand 4, single buffered']
    #allocation11 [shape = 'u8[32768]{0}', space=vmem, size = 0x8000, scoped, tag = 'output window, operand 0']
    %10 = vsyncpa [#allocation3], 0
    %s11 = scalar_lea.sflag [#allocation3], 1
    %12 = vsyncpa %s11, 0
    %13 = vsyncpa [#allocation6], 0
    %14 = vsyncpa [#allocation9], 0
    %15 = vsyncpa [#allocation4], 0
    %s16 = scalar_lea.sflag [#allocation4], 1
    %17 = vsyncpa %s16, 0
    loop: start=0, step=1, limit=4
    $region2: #{tpu_custom_call.1} parent=1 // loop_pre_header
      _
    $region3: #{tpu_custom_call.1} parent=1 // loop_header
      %s19 = sphi 0, %s23
      %p20 = scmp.ge.s32.totalorder %s19, 4
      %s29 = sphi 0, %s31
      %s32 = sphi 0, %s29
      %s33 = sphi 0, %s32
      %s49 = sphi 0, %s33
      %s53 = sphi 0, %s53
      %s55 = sphi 0, %s53
      %s56 = sphi 0, %s55
      %s70 = sphi 0, %s56
      %s74 = sphi 0, %s74
      %s76 = sphi 0, %s74
      %s77 = sphi 0, %s76
      %s91 = sphi 0, %s77
      %s95 = sphi 0, %s95
      %s97 = sphi 0, %s95
      %s98 = sphi 0, %s97
      %s112 = sphi 0, %s98
      %s116 = sphi 0, %s116
      %s118 = sphi 0, %s116
      %s119 = sphi 0, %s118
      %s133 = sphi 0, %s119
      %s139 = sphi 0, %s141
      %s142 = sphi 0, %s139
      %s143 = sphi 0, %s142
      %s159 = sphi 0, %s143
    $region4: #{tpu_custom_call.1} parent=1 // loop_header_branch
      %22 = sbr.rel (%p20) target = $region8
    $region5: #{tpu_custom_call.1} parent=1 // loop_body
      %s24 = ssub.s32 %s19, 1
      %s25 = ssub.s32 %s19, 2
      %s26 = sadd.s32 %s19, 1
      %s27 = ssub.s32 %s19, %s26
      %p28 = scmp.eq.s32.totalorder %s27, 0
      %s30 = sadd.s32 %s29, 1
      %s31 = scalar_select %p28, %s29, %s30
      %p34 = pneg %p28
      %p35 = scmp.eq.s32.totalorder %s19, 1
      %p36 = por %p34, %p35
      %p37 = scmp.ne.s32.totalorder %s29, %s32
      %p38 = scmp.eq.s32.totalorder %s19, 0
      %p39 = por %p37, %p38
      %p40 = scmp.ne.s32.totalorder %s29, %s32
      %p41 = scmp.eq.s32.totalorder %s24, 1
      %p42 = por %p40, %p41
      %p43 = scmp.ne.s32.totalorder %s32, %s33
      %p44 = scmp.eq.s32.totalorder %s24, 0
      %p45 = por %p43, %p44
      %p46 = scmp.ne.s32.totalorder %s32, %s33
      %p47 = scmp.eq.s32.totalorder %s25, 1
      %p48 = por %p46, %p47
      %p50 = scmp.ne.s32.totalorder %s33, %s49
      %p51 = scmp.eq.s32.totalorder %s25, 0
      %p52 = por %p50, %p51
      %s54 = sadd.s32 %s53, 1
      %p57 = scmp.eq.s32.totalorder %s19, 1
      %p58 = scmp.ne.s32.totalorder %s53, %s55
      %p59 = scmp.eq.s32.totalorder %s19, 0
      %p60 = por %p58, %p59
      %p61 = scmp.ne.s32.totalorder %s53, %s55
      %p62 = scmp.eq.s32.totalorder %s24, 1
      %p63 = por %p61, %p62
      %p64 = scmp.ne.s32.totalorder %s55, %s56
      %p65 = scmp.eq.s32.totalorder %s24, 0
      %p66 = por %p64, %p65
      %p67 = scmp.ne.s32.totalorder %s55, %s56
      %p68 = scmp.eq.s32.totalorder %s25, 1
      %p69 = por %p67, %p68
      %p71 = scmp.ne.s32.totalorder %s56, %s70
      %p72 = scmp.eq.s32.totalorder %s25, 0
      %p73 = por %p71, %p72
      %s75 = sadd.s32 %s74, 1
      %p78 = scmp.eq.s32.totalorder %s19, 1
      %p79 = scmp.ne.s32.totalorder %s74, %s76
      %p80 = scmp.eq.s32.totalorder %s19, 0
      %p81 = por %p79, %p80
      %p82 = scmp.ne.s32.totalorder %s74, %s76
      %p83 = scmp.eq.s32.totalorder %s24, 1
      %p84 = por %p82, %p83
      %p85 = scmp.ne.s32.totalorder %s76, %s77
      %p86 = scmp.eq.s32.totalorder %s24, 0
      %p87 = por %p85, %p86
      %p88 = scmp.ne.s32.totalorder %s76, %s77
      %p89 = scmp.eq.s32.totalorder %s25, 1
      %p90 = por %p88, %p89
      %p92 = scmp.ne.s32.totalorder %s77, %s91
      %p93 = scmp.eq.s32.totalorder %s25, 0
      %p94 = por %p92, %p93
      %s96 = sadd.s32 %s95, 1
      %p99 = scmp.eq.s32.totalorder %s19, 1
      %p100 = scmp.ne.s32.totalorder %s95, %s97
      %p101 = scmp.eq.s32.totalorder %s19, 0
      %p102 = por %p100, %p101
      %p103 = scmp.ne.s32.totalorder %s95, %s97
      %p104 = scmp.eq.s32.totalorder %s24, 1
      %p105 = por %p103, %p104
      %p106 = scmp.ne.s32.totalorder %s97, %s98
      %p107 = scmp.eq.s32.totalorder %s24, 0
      %p108 = por %p106, %p107
      %p109 = scmp.ne.s32.totalorder %s97, %s98
      %p110 = scmp.eq.s32.totalorder %s25, 1
      %p111 = por %p109, %p110
      %p113 = scmp.ne.s32.totalorder %s98, %s112
      %p114 = scmp.eq.s32.totalorder %s25, 0
      %p115 = por %p113, %p114
      %s117 = sadd.s32 %s116, 1
      %p120 = scmp.eq.s32.totalorder %s19, 1
      %p121 = scmp.ne.s32.totalorder %s116, %s118
      %p122 = scmp.eq.s32.totalorder %s19, 0
      %p123 = por %p121, %p122
      %p124 = scmp.ne.s32.totalorder %s116, %s118
      %p125 = scmp.eq.s32.totalorder %s24, 1
      %p126 = por %p124, %p125
      %p127 = scmp.ne.s32.totalorder %s118, %s119
      %p128 = scmp.eq.s32.totalorder %s24, 0
      %p129 = por %p127, %p128
      %p130 = scmp.ne.s32.totalorder %s118, %s119
      %p131 = scmp.eq.s32.totalorder %s25, 1
      %p132 = por %p130, %p131
      %p134 = scmp.ne.s32.totalorder %s119, %s133
      %p135 = scmp.eq.s32.totalorder %s25, 0
      %p136 = por %p134, %p135
      %s137 = ssub.s32 %s19, %s26
      %p138 = scmp.eq.s32.totalorder %s137, 0
      %s140 = sadd.s32 %s139, 1
      %s141 = scalar_select %p138, %s139, %s140
      %p144 = pneg %p138
      %p145 = scmp.eq.s32.totalorder %s19, 1
      %p146 = por %p144, %p145
      %p147 = scmp.ne.s32.totalorder %s139, %s142
      %p148 = scmp.eq.s32.totalorder %s19, 0
      %p149 = por %p147, %p148
      %p150 = scmp.ne.s32.totalorder %s139, %s142
      %p151 = scmp.eq.s32.totalorder %s24, 1
      %p152 = por %p150, %p151
      %p153 = scmp.ne.s32.totalorder %s142, %s143
      %p154 = scmp.eq.s32.totalorder %s24, 0
      %p155 = por %p153, %p154
      %p156 = scmp.ne.s32.totalorder %s142, %s143
      %p157 = scmp.eq.s32.totalorder %s25, 1
      %p158 = por %p156, %p157
      %p160 = scmp.ne.s32.totalorder %s143, %s159
      %p161 = scmp.eq.s32.totalorder %s25, 0
      %p162 = por %p160, %p161
      %p163 = scmp.le.s32.totalorder 1, %s19
      %p164 = scmp.lt.s32.totalorder %s19, 3
      %p165 = pnand %p163, %p164
      %p166 = pneg %p165
      // Predicated region
      $region9: #{tpu_custom_call.1} parent=5 // pred_check
        _
      $region10: #{tpu_custom_call.1} parent=5 // pred_check_branch
        %168 = sbr.rel (%p165) target = $region12
      $region11: #{tpu_custom_call.1} parent=5 // pred_region
        %s169 = ssub.s32 %s19, 1
        // Predicated region
        $region13: #{tpu_custom_call.1} parent=11 // pred_check
          %p170 = pneg %p66
        $region14: #{tpu_custom_call.1} parent=11 // pred_check_branch
          %172 = sbr.rel (%p170) target = $region16
        $region15: #{tpu_custom_call.1} parent=11 // pred_region
          %s174 = ssub.s32 2048, 2048
          %175 = vsyncadd [#allocation6], %s174
          %s176 = sshll.u32 [#allocation5], 4
          %s177 = int_to_ptr.vmem [resolvable:$true] %s176
          %182 = dma.hbm_to_vmem [thread:$0]  %s1, 2048, %s177, [#allocation6], 128, 128, 8
        $region16: #{tpu_custom_call.1} parent=11 // pred_fallthru
          _
        // Predicated region
        $region17: #{tpu_custom_call.1} parent=11 // pred_check
          %p183 = pneg %p87
        $region18: #{tpu_custom_call.1} parent=11 // pred_check_branch
          %185 = sbr.rel (%p183) target = $region20
        $region19: #{tpu_custom_call.1} parent=11 // pred_region
          %s187 = ssub.s32 16, 16
          %188 = vsyncadd [#allocation6], %s187
          %s190 = sshll.u32 [#allocation7], 4
          %s191 = int_to_ptr.vmem [resolvable:$true] %s190
          %193 = dma.hbm_to_vmem [thread:$0]  %s2, 16, %s191, [#allocation6]
        $region20: #{tpu_custom_call.1} parent=11 // pred_fallthru
          _
        // Predicated region
        $region21: #{tpu_custom_call.1} parent=11 // pred_check
          %p194 = pneg %p108
        $region22: #{tpu_custom_call.1} parent=11 // pred_check_branch
          %196 = sbr.rel (%p194) target = $region24
        $region23: #{tpu_custom_call.1} parent=11 // pred_region
          %s198 = ssub.s32 2048, 2048
          %199 = vsyncadd [#allocation9], %s198
          %s200 = sshll.u32 [#allocation8], 4
          %s201 = int_to_ptr.vmem [resolvable:$true] %s200
          %206 = dma.hbm_to_vmem [thread:$0]  %s3, 2048, %s201, [#allocation9], 128, 128, 8
        $region24: #{tpu_custom_call.1} parent=11 // pred_fallthru
          _
        // Predicated region
        $region25: #{tpu_custom_call.1} parent=11 // pred_check
          %p207 = pneg %p129
        $region26: #{tpu_custom_call.1} parent=11 // pred_check_branch
          %209 = sbr.rel (%p207) target = $region28
        $region27: #{tpu_custom_call.1} parent=11 // pred_region
          %s211 = ssub.s32 16, 16
          %212 = vsyncadd [#allocation9], %s211
          %s214 = sshll.u32 [#allocation10], 4
          %s215 = int_to_ptr.vmem [resolvable:$true] %s214
          %217 = dma.hbm_to_vmem [thread:$0]  %s4, 16, %s215, [#allocation9]
        $region28: #{tpu_custom_call.1} parent=11 // pred_fallthru
          _
      $region12: #{tpu_custom_call.1} parent=5 // pred_fallthru
        _
      %p218 = scmp.lt.s32.totalorder %s19, 2
      // Predicated region
      $region29: #{tpu_custom_call.1} parent=5 // pred_check
        %p219 = pneg %p218
      $region30: #{tpu_custom_call.1} parent=5 // pred_check_branch
        %221 = sbr.rel (%p219) target = $region32
      $region31: #{tpu_custom_call.1} parent=5 // pred_region
        // Predicated region
        $region33: #{tpu_custom_call.1} parent=31 // pred_check
          %p222 = pneg %p39
        $region34: #{tpu_custom_call.1} parent=31 // pred_check_branch
          %224 = sbr.rel (%p222) target = $region36
        $region35: #{tpu_custom_call.1} parent=31 // pred_region
          %s225 = sand.u32 %s29, 1
          %s226 = scalar_lea.sflag [#allocation3], %s225
          %s227 = sand.u32 %s29, 1
          %s228 = smul.addr %s227, 32
          %s229 = scalar_lea.vmem [#allocation2], %s228
          %s230 = smul.u32 4, %s19
          %s232 = ssub.s32 512, 512
          %233 = vsyncadd %s226, %s232
          %s234 = smul.addr %s230, 128
          %s235 = scalar_lea.hbm %s0, %s234
          %s236 = sshll.u32 %s229, 4
          %s237 = int_to_ptr.vmem [resolvable:$true] %s236
          %242 = dma.hbm_to_vmem [thread:$0]  %s235, 512, %s237, %s226, 128, 128, 8
        $region36: #{tpu_custom_call.1} parent=31 // pred_fallthru
          _
      $region32: #{tpu_custom_call.1} parent=5 // pred_fallthru
        _
      %p243 = scmp.le.s32.totalorder 1, %s19
      %p244 = scmp.lt.s32.totalorder %s19, 3
      %p245 = pnand %p243, %p244
      %p246 = pneg %p245
      // Predicated region
      $region37: #{tpu_custom_call.1} parent=5 // pred_check
        _
      $region38: #{tpu_custom_call.1} parent=5 // pred_check_branch
        %248 = sbr.rel (%p245) target = $region40
      $region39: #{tpu_custom_call.1} parent=5 // pred_region
        %s249 = ssub.s32 %s19, 1
        %s250 = sand.u32 %s32, 1
        %s251 = scalar_lea.sflag [#allocation3], %s250
        %s252 = sand.u32 %s32, 1
        %s253 = smul.addr %s252, 32
        %s254 = scalar_lea.vmem [#allocation2], %s253
        // Predicated region
        $region41: #{tpu_custom_call.1} parent=39 // pred_check
          %p255 = pneg %p45
        $region42: #{tpu_custom_call.1} parent=39 // pred_check_branch
          %257 = sbr.rel (%p255) target = $region44
        $region43: #{tpu_custom_call.1} parent=39 // pred_region
          %258 = dma.done %s251, 512
        $region44: #{tpu_custom_call.1} parent=39 // pred_fallthru
          _
        // Predicated region
        $region45: #{tpu_custom_call.1} parent=39 // pred_check
          %p259 = pneg %p66
        $region46: #{tpu_custom_call.1} parent=39 // pred_check_branch
          %261 = sbr.rel (%p259) target = $region48
        $region47: #{tpu_custom_call.1} parent=39 // pred_region
          %262 = dma.done [#allocation6], 2048
        $region48: #{tpu_custom_call.1} parent=39 // pred_fallthru
          _
        // Predicated region
        $region49: #{tpu_custom_call.1} parent=39 // pred_check
          %p263 = pneg %p87
        $region50: #{tpu_custom_call.1} parent=39 // pred_check_branch
          %265 = sbr.rel (%p263) target = $region52
        $region51: #{tpu_custom_call.1} parent=39 // pred_region
          %266 = dma.done [#allocation6], 16
        $region52: #{tpu_custom_call.1} parent=39 // pred_fallthru
          _
        // Predicated region
        $region53: #{tpu_custom_call.1} parent=39 // pred_check
          %p267 = pneg %p108
        $region54: #{tpu_custom_call.1} parent=39 // pred_check_branch
          %269 = sbr.rel (%p267) target = $region56
        $region55: #{tpu_custom_call.1} parent=39 // pred_region
          %270 = dma.done [#allocation9], 2048
        $region56: #{tpu_custom_call.1} parent=39 // pred_fallthru
          _
        // Predicated region
        $region57: #{tpu_custom_call.1} parent=39 // pred_check
          %p271 = pneg %p129
        $region58: #{tpu_custom_call.1} parent=39 // pred_check_branch
          %273 = sbr.rel (%p271) target = $region60
        $region59: #{tpu_custom_call.1} parent=39 // pred_region
          %274 = dma.done [#allocation9], 16
        $region60: #{tpu_custom_call.1} parent=39 // pred_fallthru
          _
        %s275 = sand.u32 %s32, 1
        %s276 = scalar_lea.sflag [#allocation3], %s275
        %s277 = sand.u32 %s32, 1
        %s278 = smul.addr %s277, 32
        %s279 = scalar_lea.vmem [#allocation2], %s278
        %p280 = pneg %p45
        %p281 = pneg %p42
        %p282 = pneg %p66
        %p283 = pneg %p63
        %p284 = pneg %p87
        %p285 = pneg %p84
        %p286 = pneg %p108
        %p287 = pneg %p105
        %p288 = pneg %p129
        %p289 = pneg %p126
        %p290 = pneg %p155
        %p291 = pneg %p152
        %s292 = sand.u32 %s142, 1
        %s293 = scalar_lea.sflag [#allocation4], %s292
        %s294 = sand.u32 %s142, 1
        %s295 = smul.addr %s294, 32
        %s296 = scalar_lea.vmem [#allocation11], %s295
        %s297 = smul.u32 4, %s24
        %s298 = smul.u32 4, %s24
        %v299 = vld [vmem:[%s254] sm:$0xff]
        %v300 = vld [vmem:[%s254 + $0x8] sm:$0xff]
        %v301 = vld [vmem:[%s254 + $0x10] sm:$0xff]
        %v302 = vld [vmem:[%s254 + $0x18] sm:$0xff]
        %v303 = vld [vmem:[#allocation5] sm:$0xff]
        %v304 = vld [vmem:[#allocation5 + $0x8] sm:$0xff]
        %v305 = vld [vmem:[#allocation5 + $0x10] sm:$0xff]
        %v306 = vld [vmem:[#allocation5 + $0x18] sm:$0xff]
        %v307 = vld [vmem:[#allocation5 + $0x20] sm:$0xff]
        %v308 = vld [vmem:[#allocation5 + $0x28] sm:$0xff]
        %v309 = vld [vmem:[#allocation5 + $0x30] sm:$0xff]
        %v310 = vld [vmem:[#allocation5 + $0x38] sm:$0xff]
        %v311 = vld [vmem:[#allocation5 + $0x40] sm:$0xff]
        %v312 = vld [vmem:[#allocation5 + $0x48] sm:$0xff]
        %v313 = vld [vmem:[#allocation5 + $0x50] sm:$0xff]
        %v314 = vld [vmem:[#allocation5 + $0x58] sm:$0xff]
        %v315 = vld [vmem:[#allocation5 + $0x60] sm:$0xff]
        %v316 = vld [vmem:[#allocation5 + $0x68] sm:$0xff]
        %v317 = vld [vmem:[#allocation5 + $0x70] sm:$0xff]
        %v318 = vld [vmem:[#allocation5 + $0x78] sm:$0xff]
        %v319 = vld [vmem:[#allocation7] sm:$0x1]
        %v321 = vlaneseq
        %v322 = vshrl.u32 %v321, 7
        %v323 = vsub.s32 0, %v322
        %v324 = vrot.slane %v319, %v323
        %326 = vmatprep.subr.mxu0 0.0
        %327 = vmatpush1.msra.mxu0 %v303
        %328 = vmatprep.subr.mxu0 0.0
        %329 = vmatpush1.msra.mxu0 %v304
        %330 = vmatprep.subr.mxu0 0.0
        %331 = vmatpush1.msra.mxu0 %v305
        %332 = vmatprep.subr.mxu0 0.0
        %333 = vmatpush1.msra.mxu0 %v306
        %334 = vmatprep.subr.mxu0 0.0
        %335 = vmatpush1.msra.mxu0 %v307
        %336 = vmatprep.subr.mxu0 0.0
        %337 = vmatpush1.msra.mxu0 %v308
        %338 = vmatprep.subr.mxu0 0.0
        %339 = vmatpush1.msra.mxu0 %v309
        %340 = vmatprep.subr.mxu0 0.0
        %341 = vmatpush1.msra.mxu0 %v310
        %342 = vmatprep.subr.mxu0 0.0
        %343 = vmatpush1.msra.mxu0 %v311
        %344 = vmatprep.subr.mxu0 0.0
        %345 = vmatpush1.msra.mxu0 %v312
        %346 = vmatprep.subr.mxu0 0.0
        %347 = vmatpush1.msra.mxu0 %v313
        %348 = vmatprep.subr.mxu0 0.0
        %349 = vmatpush1.msra.mxu0 %v314
        %350 = vmatprep.subr.mxu0 0.0
        %351 = vmatpush1.msra.mxu0 %v315
        %352 = vmatprep.subr.mxu0 0.0
        %353 = vmatpush1.msra.mxu0 %v316
        %354 = vmatprep.subr.mxu0 0.0
        %355 = vmatpush1.msra.mxu0 %v317
        %356 = vmatprep.subr.mxu0 0.0
        %357 = vmatpush1.msra.mxu0 %v318
        %358 = vmatprep.subr.mxu0 0.0
        %359 = vmatpush1.msra.mxu0 0.0
        %360 = vmatprep.subr.mxu0 0.0
        %361 = vmatpush1.msra.mxu0 0.0
        %362 = vmatprep.subr.mxu0 0.0
        %363 = vmatpush1.msra.mxu0 0.0
        %364 = vmatprep.subr.mxu0 0.0
        %365 = vmatpush1.msra.mxu0 0.0
        %366 = vmatprep.subr.mxu0 0.0
        %367 = vmatpush1.msra.mxu0 0.0
        %368 = vmatprep.subr.mxu0 0.0
        %369 = vmatpush1.msra.mxu0 0.0
        %370 = vmatprep.subr.mxu0 0.0
        %371 = vmatpush1.msra.mxu0 0.0
        %372 = vmatprep.subr.mxu0 0.0
        %373 = vmatpush1.msra.mxu0 0.0
        %374 = vmatprep.subr.mxu0 0.0
        %375 = vmatpush1.msra.mxu0 0.0
        %376 = vmatprep.subr.mxu0 0.0
        %377 = vmatpush1.msra.mxu0 0.0
        %378 = vmatprep.subr.mxu0 0.0
        %379 = vmatpush1.msra.mxu0 0.0
        %380 = vmatprep.subr.mxu0 0.0
        %381 = vmatpush1.msra.mxu0 0.0
        %382 = vmatprep.subr.mxu0 0.0
        %383 = vmatpush1.msra.mxu0 0.0
        %384 = vmatprep.subr.mxu0 0.0
        %385 = vmatpush1.msra.mxu0 0.0
        %386 = vmatprep.subr.mxu0 0.0
        %387 = vmatpush1.msra.mxu0 0.0
        %388 = vmatprep.subr.mxu0 0.0
        %389 = vmatpush1.msra.mxu0 0.0
        %390 = vmatprep.mubr.f32.mxu0 0.0
        %391 = vmatmul.mubr.f32.gmra.mrb[0].mxu0 %v299
        %v392 = vpop.f32.mrb[0].mxu0
        %v393 = vadd.f32 %v324, %v392
        %v394 = vpop.f32.mrb[0].mxu0
        %395 = vmatprep.mubr.f32.mxu0 0.0
        %396 = vmatmul.mubr.f32.gmra.mrb[0].mxu0 %v300
        %v397 = vpop.f32.mrb[0].mxu0
        %v398 = vadd.f32 %v324, %v397
        %v399 = vpop.f32.mrb[0].mxu0
        %400 = vmatprep.mubr.f32.mxu0 0.0
        %401 = vmatmul.mubr.f32.gmra.mrb[0].mxu0 %v301
        %v402 = vpop.f32.mrb[0].mxu0
        %v403 = vadd.f32 %v324, %v402
        %v404 = vpop.f32.mrb[0].mxu0
        %405 = vmatprep.mubr.f32.mxu0 0.0
        %406 = vmatmul.mubr.f32.gmra.mrb[0].mxu0 %v302
        %v407 = vpop.f32.mrb[0].mxu0
        %v408 = vadd.f32 %v324, %v407
        %v409 = vpop.f32.mrb[0].mxu0
        %410 = vdwg.mxu0
        %v411 = vmax.f32 %v393, 0.0
        %v412 = vmax.f32 %v398, 0.0
        %v413 = vmax.f32 %v403, 0.0
        %v414 = vmax.f32 %v408, 0.0
        %v415 = vld [vmem:[#allocation8] sm:$0xff]
        %v416 = vld [vmem:[#allocation8 + $0x8] sm:$0xff]
        %v417 = vld [vmem:[#allocation8 + $0x10] sm:$0xff]
        %v418 = vld [vmem:[#allocation8 + $0x18] sm:$0xff]
        %v419 = vld [vmem:[#allocation8 + $0x20] sm:$0xff]
        %v420 = vld [vmem:[#allocation8 + $0x28] sm:$0xff]
        %v421 = vld [vmem:[#allocation8 + $0x30] sm:$0xff]
        %v422 = vld [vmem:[#allocation8 + $0x38] sm:$0xff]
        %v423 = vld [vmem:[#allocation8 + $0x40] sm:$0xff]
        %v424 = vld [vmem:[#allocation8 + $0x48] sm:$0xff]
        %v425 = vld [vmem:[#allocation8 + $0x50] sm:$0xff]
        %v426 = vld [vmem:[#allocation8 + $0x58] sm:$0xff]
        %v427 = vld [vmem:[#allocation8 + $0x60] sm:$0xff]
        %v428 = vld [vmem:[#allocation8 + $0x68] sm:$0xff]
        %v429 = vld [vmem:[#allocation8 + $0x70] sm:$0xff]
        %v430 = vld [vmem:[#allocation8 + $0x78] sm:$0xff]
        %v431 = vld [vmem:[#allocation10] sm:$0x1]
        %v433 = vlaneseq
        %v434 = vshrl.u32 %v433, 7
        %v435 = vsub.s32 0, %v434
        %v436 = vrot.slane %v431, %v435
        %438 = vmatprep.subr.mxu0 0.0
        %439 = vmatpush1.msra.mxu0 %v415
        %440 = vmatprep.subr.mxu0 0.0
        %441 = vmatpush1.msra.mxu0 %v416
        %442 = vmatprep.subr.mxu0 0.0
        %443 = vmatpush1.msra.mxu0 %v417
        %444 = vmatprep.subr.mxu0 0.0
        %445 = vmatpush1.msra.mxu0 %v418
        %446 = vmatprep.subr.mxu0 0.0
        %447 = vmatpush1.msra.mxu0 %v419
        %448 = vmatprep.subr.mxu0 0.0
        %449 = vmatpush1.msra.mxu0 %v420
        %450 = vmatprep.subr.mxu0 0.0
        %451 = vmatpush1.msra.mxu0 %v421
        %452 = vmatprep.subr.mxu0 0.0
        %453 = vmatpush1.msra.mxu0 %v422
        %454 = vmatprep.subr.mxu0 0.0
        %455 = vmatpush1.msra.mxu0 %v423
        %456 = vmatprep.subr.mxu0 0.0
        %457 = vmatpush1.msra.mxu0 %v424
        %458 = vmatprep.subr.mxu0 0.0
        %459 = vmatpush1.msra.mxu0 %v425
        %460 = vmatprep.subr.mxu0 0.0
        %461 = vmatpush1.msra.mxu0 %v426
        %462 = vmatprep.subr.mxu0 0.0
        %463 = vmatpush1.msra.mxu0 %v427
        %464 = vmatprep.subr.mxu0 0.0
        %465 = vmatpush1.msra.mxu0 %v428
        %466 = vmatprep.subr.mxu0 0.0
        %467 = vmatpush1.msra.mxu0 %v429
        %468 = vmatprep.subr.mxu0 0.0
        %469 = vmatpush1.msra.mxu0 %v430
        %470 = vmatprep.subr.mxu0 0.0
        %471 = vmatpush1.msra.mxu0 0.0
        %472 = vmatprep.subr.mxu0 0.0
        %473 = vmatpush1.msra.mxu0 0.0
        %474 = vmatprep.subr.mxu0 0.0
        %475 = vmatpush1.msra.mxu0 0.0
        %476 = vmatprep.subr.mxu0 0.0
        %477 = vmatpush1.msra.mxu0 0.0
        %478 = vmatprep.subr.mxu0 0.0
        %479 = vmatpush1.msra.mxu0 0.0
        %480 = vmatprep.subr.mxu0 0.0
        %481 = vmatpush1.msra.mxu0 0.0
        %482 = vmatprep.subr.mxu0 0.0
        %483 = vmatpush1.msra.mxu0 0.0
        %484 = vmatprep.subr.mxu0 0.0
        %485 = vmatpush1.msra.mxu0 0.0
        %486 = vmatprep.subr.mxu0 0.0
        %487 = vmatpush1.msra.mxu0 0.0
        %488 = vmatprep.subr.mxu0 0.0
        %489 = vmatpush1.msra.mxu0 0.0
        %490 = vmatprep.subr.mxu0 0.0
        %491 = vmatpush1.msra.mxu0 0.0
        %492 = vmatprep.subr.mxu0 0.0
        %493 = vmatpush1.msra.mxu0 0.0
        %494 = vmatprep.subr.mxu0 0.0
        %495 = vmatpush1.msra.mxu0 0.0
        %496 = vmatprep.subr.mxu0 0.0
        %497 = vmatpush1.msra.mxu0 0.0
        %498 = vmatprep.subr.mxu0 0.0
        %499 = vmatpush1.msra.mxu0 0.0
        %500 = vmatprep.subr.mxu0 0.0
        %501 = vmatpush1.msra.mxu0 0.0
        %502 = vmatprep.mubr.f32.mxu0 0.0
        %503 = vmatmul.mubr.f32.gmra.mrb[0].mxu0 %v411
        %v504 = vpop.f32.mrb[0].mxu0
        %v505 = vadd.f32 %v436, %v504
        %v506 = vpop.f32.mrb[0].mxu0
        %507 = vmatprep.mubr.f32.mxu0 0.0
        %508 = vmatmul.mubr.f32.gmra.mrb[0].mxu0 %v412
        %v509 = vpop.f32.mrb[0].mxu0
        %v510 = vadd.f32 %v436, %v509
        %v511 = vpop.f32.mrb[0].mxu0
        %512 = vmatprep.mubr.f32.mxu0 0.0
        %513 = vmatmul.mubr.f32.gmra.mrb[0].mxu0 %v413
        %v514 = vpop.f32.mrb[0].mxu0
        %v515 = vadd.f32 %v436, %v514
        %v516 = vpop.f32.mrb[0].mxu0
        %517 = vmatprep.mubr.f32.mxu0 0.0
        %518 = vmatmul.mubr.f32.gmra.mrb[0].mxu0 %v414
        %v519 = vpop.f32.mrb[0].mxu0
        %v520 = vadd.f32 %v436, %v519
        %v521 = vpop.f32.mrb[0].mxu0
        %522 = vdwg.mxu0
        %v523 = vmax.f32 %v505, 0.0
        %v524 = vmax.f32 %v510, 0.0
        %v525 = vmax.f32 %v515, 0.0
        %v526 = vmax.f32 %v520, 0.0
        %527 = vst [vmem:[%s296] sm:$0xff] %v523
        %528 = vst [vmem:[%s296 + $0x8] sm:$0xff] %v524
        %529 = vst [vmem:[%s296 + $0x10] sm:$0xff] %v525
        %530 = vst [vmem:[%s296 + $0x18] sm:$0xff] %v526
        %s531 = sand.u32 %s142, 1
        %s532 = scalar_lea.sflag [#allocation4], %s531
        %s533 = sand.u32 %s142, 1
        %s534 = smul.addr %s533, 32
        %s535 = scalar_lea.vmem [#allocation11], %s534
        // Predicated region
        $region61: #{tpu_custom_call.1} parent=39 // pred_check
          %p536 = pneg %p152
        $region62: #{tpu_custom_call.1} parent=39 // pred_check_branch
          %538 = sbr.rel (%p536) target = $region64
        $region63: #{tpu_custom_call.1} parent=39 // pred_region
          %s539 = smul.u32 4, %s24
          %s541 = ssub.s32 512, 512
          %542 = vsyncadd %s532, %s541
          %s543 = smul.addr %s539, 128
          %s544 = scalar_lea.hbm %s5, %s543
          %s545 = sshll.u32 %s535, 4
          %s546 = int_to_ptr.vmem [resolvable:$true] %s545
          %551 = dma.vmem_to_hbm [thread:$0]  %s546, 512, %s544, %s532, 128, 128, 8
        $region64: #{tpu_custom_call.1} parent=39 // pred_fallthru
          _
      $region40: #{tpu_custom_call.1} parent=5 // pred_fallthru
        _
      %p552 = scmp.le.s32.totalorder 2, %s19
      // Predicated region
      $region65: #{tpu_custom_call.1} parent=5 // pred_check
        %p553 = pneg %p552
      $region66: #{tpu_custom_call.1} parent=5 // pred_check_branch
        %555 = sbr.rel (%p553) target = $region68
      $region67: #{tpu_custom_call.1} parent=5 // pred_region
        %s556 = ssub.s32 %s19, 2
        // Predicated region
        $region69: #{tpu_custom_call.1} parent=67 // pred_check
          %p557 = pneg %p158
        $region70: #{tpu_custom_call.1} parent=67 // pred_check_branch
          %559 = sbr.rel (%p557) target = $region72
        $region71: #{tpu_custom_call.1} parent=67 // pred_region
          %s560 = sand.u32 %s143, 1
          %s561 = scalar_lea.sflag [#allocation4], %s560
          %s562 = sand.u32 %s143, 1
          %s563 = smul.addr %s562, 32
          %s564 = scalar_lea.vmem [#allocation11], %s563
          %565 = dma.done %s561, 512
        $region72: #{tpu_custom_call.1} parent=67 // pred_fallthru
          _
      $region68: #{tpu_custom_call.1} parent=5 // pred_fallthru
        _
    $region6: #{tpu_custom_call.1} parent=1 // loop_footer
      %s23 = sadd.s32 1, %s19
    $region7: #{tpu_custom_call.1} parent=1 // loop_footer_branch
      %18 = sbr.rel target = $region3
    $region8: #{tpu_custom_call.1} parent=1 // loop_exit
      _
    %566 = vsyncpa [#allocation3], 1
    %s567 = scalar_lea.sflag [#allocation3], 1
    %568 = vsyncpa %s567, 1
    %569 = vsyncpa [#allocation6], 1
    %570 = vsyncpa [#allocation9], 1
    %571 = vsyncpa [#allocation4], 1
    %s572 = scalar_lea.sflag [#allocation4], 1
    %573 = vsyncpa %s572, 1

// kernel: tpu_custom_call.1
$region0: #{tpu_custom_call.1}
  #allocation0 [shape = 'u32[]', space=smem, size = 0x4, offset = 0x4, fixed_abs, tag = 'smem constant byte address 0x4 - core index']
  #allocation1 [shape = 'u32[144,128]{1,0:T(1,128)}', space=vmem, size = 0x12000, scoped, tag = 'internal scratch']
  %s0 = inlined_call_operand.hbm [shape: f32[64,128], index: 0, kind: input, shape index: {}]
  %s1 = inlined_call_operand.hbm [shape: f32[128,128], index: 1, kind: input, shape index: {}]
  %s2 = inlined_call_operand.hbm [shape: f32[1,128], index: 2, kind: input, shape index: {}]
  %s3 = inlined_call_operand.hbm [shape: f32[128,128], index: 3, kind: input, shape index: {}]
  %s4 = inlined_call_operand.hbm [shape: f32[1,128], index: 4, kind: input, shape index: {}]
  %s5 = inlined_call_operand.hbm [shape: f32[64,128], index: 5, kind: output, shape index: {}]
  %s6 = sld [smem:[#allocation0]]
  $region73: #{tpu_custom_call.1} parent=0
    _
  %s8 = ssub.s32 1, %s6
  %s9 = scalar_select 0, %s8, %s6
  $region1: #{tpu_custom_call.1} parent=0
    #allocation2 [shape = 'u8[32768]{0}', space=vmem, size = 0x8000, scoped, tag = 'input window, operand 0']
    #allocation3 [shape = 's32[2]{0}', space=sflag, size = 0x8, scoped, tag = 'scoped memory for tpu_custom_call.1']
    #allocation4 [shape = 's32[2]{0}', space=sflag, size = 0x8, scoped, tag = 'scoped memory for tpu_custom_call.1']
    #allocation5 [shape = 'u8[65536]{0}', space=vmem, size = 0x10000, scoped, tag = 'input window, operand 1, single buffered']
    #allocation6 [shape = 's32[1]{0}', space=sflag, size = 0x4, scoped, tag = 'scoped memory for tpu_custom_call.1']
    #allocation7 [shape = 'u8[512]{0}', space=vmem, size = 0x400, scoped, tag = 'input window, operand 2, single buffered']
    #allocation8 [shape = 'u8[65536]{0}', space=vmem, size = 0x10000, scoped, tag = 'input window, operand 3, single buffered']
    #allocation9 [shape = 's32[1]{0}', space=sflag, size = 0x4, scoped, tag = 'scoped memory for tpu_custom_call.1']
    #allocation10 [shape = 'u8[512]{0}', space=vmem, size = 0x400, scoped, tag = 'input window, operand 4, single buffered']
    #allocation11 [shape = 'u8[32768]{0}', space=vmem, size = 0x8000, scoped, tag = 'output window, operand 0']
    %10 = vsyncpa [#allocation3], 0
    %s11 = scalar_lea.sflag [#allocation3], 1
    %12 = vsyncpa %s11, 0
    %13 = vsyncpa [#allocation6], 0
    %14 = vsyncpa [#allocation9], 0
    %15 = vsyncpa [#allocation4], 0
    %s16 = scalar_lea.sflag [#allocation4], 1
    %17 = vsyncpa %s16, 0
    loop: start=0, step=1, limit=4
    $region2: #{tpu_custom_call.1} parent=1 // loop_pre_header
      _
    $region3: #{tpu_custom_call.1} parent=1 // loop_header
      %s19 = sphi 0, %s23
      %p20 = scmp.ge.s32.totalorder %s19, 4
      %s29 = sphi 0, %s31
      %s32 = sphi 0, %s29
      %s33 = sphi 0, %s32
      %s49 = sphi 0, %s33
      %s53 = sphi 0, %s53
      %s55 = sphi 0, %s53
      %s56 = sphi 0, %s55
      %s70 = sphi 0, %s56
      %s74 = sphi 0, %s74
      %s76 = sphi 0, %s74
      %s77 = sphi 0, %s76
      %s91 = sphi 0, %s77
      %s95 = sphi 0, %s95
      %s97 = sphi 0, %s95
      %s98 = sphi 0, %s97
      %s112 = sphi 0, %s98
      %s116 = sphi 0, %s116
      %s118 = sphi 0, %s116
      %s119 = sphi 0, %s118
      %s133 = sphi 0, %s119
      %s139 = sphi 0, %s141
      %s142 = sphi 0, %s139
      %s143 = sphi 0, %s142
      %s159 = sphi 0, %s143
    $region4: #{tpu_custom_call.1} parent=1 // loop_header_branch
      %22 = sbr.rel (%p20) target = $region8
    $region5: #{tpu_custom_call.1} parent=1 // loop_body
      %s24 = ssub.s32 %s19, 1
      %s25 = ssub.s32 %s19, 2
      %s26 = sadd.s32 %s19, 1
      %s27 = ssub.s32 %s19, %s26
      %p28 = scmp.eq.s32.totalorder %s27, 0
      %s30 = sadd.s32 %s29, 1
      %s31 = scalar_select %p28, %s29, %s30
      %p34 = pneg %p28
      %p35 = scmp.eq.s32.totalorder %s19, 1
      %p36 = por %p34, %p35
      %p37 = scmp.ne.s32.totalorder %s29, %s32
      %p38 = scmp.eq.s32.totalorder %s19, 0
      %p39 = por %p37, %p38
      %p40 = scmp.ne.s32.totalorder %s29, %s32
      %p41 = scmp.eq.s32.totalorder %s24, 1
      %p42 = por %p40, %p41
      %p43 = scmp.ne.s32.totalorder %s32, %s33
      %p44 = scmp.eq.s32.totalorder %s24, 0
      %p45 = por %p43, %p44
      %p46 = scmp.ne.s32.totalorder %s32, %s33
      %p47 = scmp.eq.s32.totalorder %s25, 1
      %p48 = por %p46, %p47
      %p50 = scmp.ne.s32.totalorder %s33, %s49
      %p51 = scmp.eq.s32.totalorder %s25, 0
      %p52 = por %p50, %p51
      %s54 = sadd.s32 %s53, 1
      %p57 = scmp.eq.s32.totalorder %s19, 1
      %p58 = scmp.ne.s32.totalorder %s53, %s55
      %p59 = scmp.eq.s32.totalorder %s19, 0
      %p60 = por %p58, %p59
      %p61 = scmp.ne.s32.totalorder %s53, %s55
      %p62 = scmp.eq.s32.totalorder %s24, 1
      %p63 = por %p61, %p62
      %p64 = scmp.ne.s32.totalorder %s55, %s56
      %p65 = scmp.eq.s32.totalorder %s24, 0
      %p66 = por %p64, %p65
      %p67 = scmp.ne.s32.totalorder %s55, %s56
      %p68 = scmp.eq.s32.totalorder %s25, 1
      %p69 = por %p67, %p68
      %p71 = scmp.ne.s32.totalorder %s56, %s70
      %p72 = scmp.eq.s32.totalorder %s25, 0
      %p73 = por %p71, %p72
      %s75 = sadd.s32 %s74, 1
      %p78 = scmp.eq.s32.totalorder %s19, 1
      %p79 = scmp.ne.s32.totalorder %s74, %s76
      %p80 = scmp.eq.s32.totalorder %s19, 0
      %p81 = por %p79, %p80
      %p82 = scmp.ne.s32.totalorder %s74, %s76
      %p83 = scmp.eq.s32.totalorder %s24, 1
      %p84 = por %p82, %p83
      %p85 = scmp.ne.s32.totalorder %s76, %s77
      %p86 = scmp.eq.s32.totalorder %s24, 0
      %p87 = por %p85, %p86
      %p88 = scmp.ne.s32.totalorder %s76, %s77
      %p89 = scmp.eq.s32.totalorder %s25, 1
      %p90 = por %p88, %p89
      %p92 = scmp.ne.s32.totalorder %s77, %s91
      %p93 = scmp.eq.s32.totalorder %s25, 0
      %p94 = por %p92, %p93
      %s96 = sadd.s32 %s95, 1
      %p99 = scmp.eq.s32.totalorder %s19, 1
      %p100 = scmp.ne.s32.totalorder %s95, %s97
      %p101 = scmp.eq.s32.totalorder %s19, 0
      %p102 = por %p100, %p101
      %p103 = scmp.ne.s32.totalorder %s95, %s97
      %p104 = scmp.eq.s32.totalorder %s24, 1
      %p105 = por %p103, %p104
      %p106 = scmp.ne.s32.totalorder %s97, %s98
      %p107 = scmp.eq.s32.totalorder %s24, 0
      %p108 = por %p106, %p107
      %p109 = scmp.ne.s32.totalorder %s97, %s98
      %p110 = scmp.eq.s32.totalorder %s25, 1
      %p111 = por %p109, %p110
      %p113 = scmp.ne.s32.totalorder %s98, %s112
      %p114 = scmp.eq.s32.totalorder %s25, 0
      %p115 = por %p113, %p114
      %s117 = sadd.s32 %s116, 1
      %p120 = scmp.eq.s32.totalorder %s19, 1
      %p121 = scmp.ne.s32.totalorder %s116, %s118
      %p122 = scmp.eq.s32.totalorder %s19, 0
      %p123 = por %p121, %p122
      %p124 = scmp.ne.s32.totalorder %s116, %s118
      %p125 = scmp.eq.s32.totalorder %s24, 1
      %p126 = por %p124, %p125
      %p127 = scmp.ne.s32.totalorder %s118, %s119
      %p128 = scmp.eq.s32.totalorder %s24, 0
      %p129 = por %p127, %p128
      %p130 = scmp.ne.s32.totalorder %s118, %s119
      %p131 = scmp.eq.s32.totalorder %s25, 1
      %p132 = por %p130, %p131
      %p134 = scmp.ne.s32.totalorder %s119, %s133
      %p135 = scmp.eq.s32.totalorder %s25, 0
      %p136 = por %p134, %p135
      %s137 = ssub.s32 %s19, %s26
      %p138 = scmp.eq.s32.totalorder %s137, 0
      %s140 = sadd.s32 %s139, 1
      %s141 = scalar_select %p138, %s139, %s140
      %p144 = pneg %p138
      %p145 = scmp.eq.s32.totalorder %s19, 1
      %p146 = por %p144, %p145
      %p147 = scmp.ne.s32.totalorder %s139, %s142
      %p148 = scmp.eq.s32.totalorder %s19, 0
      %p149 = por %p147, %p148
      %p150 = scmp.ne.s32.totalorder %s139, %s142
      %p151 = scmp.eq.s32.totalorder %s24, 1
      %p152 = por %p150, %p151
      %p153 = scmp.ne.s32.totalorder %s142, %s143
      %p154 = scmp.eq.s32.totalorder %s24, 0
      %p155 = por %p153, %p154
      %p156 = scmp.ne.s32.totalorder %s142, %s143
      %p157 = scmp.eq.s32.totalorder %s25, 1
      %p158 = por %p156, %p157
      %p160 = scmp.ne.s32.totalorder %s143, %s159
      %p161 = scmp.eq.s32.totalorder %s25, 0
      %p162 = por %p160, %p161
      %p163 = scmp.le.s32.totalorder 1, %s19
      %p164 = scmp.lt.s32.totalorder %s19, 3
      %p165 = pnand %p163, %p164
      %p166 = pneg %p165
      // Predicated region
      $region9: #{tpu_custom_call.1} parent=5 // pred_check
        _
      $region10: #{tpu_custom_call.1} parent=5 // pred_check_branch
        %168 = sbr.rel (%p165) target = $region12
      $region11: #{tpu_custom_call.1} parent=5 // pred_region
        %s169 = ssub.s32 %s19, 1
        // Predicated region
        $region13: #{tpu_custom_call.1} parent=11 // pred_check
          %p170 = pneg %p66
        $region14: #{tpu_custom_call.1} parent=11 // pred_check_branch
          %172 = sbr.rel (%p170) target = $region16
        $region15: #{tpu_custom_call.1} parent=11 // pred_region
          %s174 = ssub.s32 2048, 2048
          %175 = vsyncadd [#allocation6], %s174
          %s176 = sshll.u32 [#allocation5], 4
          %s177 = int_to_ptr.vmem [resolvable:$true] %s176
          %182 = dma.hbm_to_vmem [thread:$0]  %s1, 2048, %s177, [#allocation6], 128, 128, 8
        $region16: #{tpu_custom_call.1} parent=11 // pred_fallthru
          _
        // Predicated region
        $region17: #{tpu_custom_call.1} parent=11 // pred_check
          %p183 = pneg %p87
        $region18: #{tpu_custom_call.1} parent=11 // pred_check_branch
          %185 = sbr.rel (%p183) target = $region20
        $region19: #{tpu_custom_call.1} parent=11 // pred_region
          %s187 = ssub.s32 16, 16
          %188 = vsyncadd [#allocation6], %s187
          %s190 = sshll.u32 [#allocation7], 4
          %s191 = int_to_ptr.vmem [resolvable:$true] %s190
          %193 = dma.hbm_to_vmem [thread:$0]  %s2, 16, %s191, [#allocation6]
        $region20: #{tpu_custom_call.1} parent=11 // pred_fallthru
          _
        // Predicated region
        $region21: #{tpu_custom_call.1} parent=11 // pred_check
          %p194 = pneg %p108
        $region22: #{tpu_custom_call.1} parent=11 // pred_check_branch
          %196 = sbr.rel (%p194) target = $region24
        $region23: #{tpu_custom_call.1} parent=11 // pred_region
          %s198 = ssub.s32 2048, 2048
          %199 = vsyncadd [#allocation9], %s198
          %s200 = sshll.u32 [#allocation8], 4
          %s201 = int_to_ptr.vmem [resolvable:$true] %s200
          %206 = dma.hbm_to_vmem [thread:$0]  %s3, 2048, %s201, [#allocation9], 128, 128, 8
        $region24: #{tpu_custom_call.1} parent=11 // pred_fallthru
          _
        // Predicated region
        $region25: #{tpu_custom_call.1} parent=11 // pred_check
          %p207 = pneg %p129
        $region26: #{tpu_custom_call.1} parent=11 // pred_check_branch
          %209 = sbr.rel (%p207) target = $region28
        $region27: #{tpu_custom_call.1} parent=11 // pred_region
          %s211 = ssub.s32 16, 16
          %212 = vsyncadd [#allocation9], %s211
          %s214 = sshll.u32 [#allocation10], 4
          %s215 = int_to_ptr.vmem [resolvable:$true] %s214
          %217 = dma.hbm_to_vmem [thread:$0]  %s4, 16, %s215, [#allocation9]
        $region28: #{tpu_custom_call.1} parent=11 // pred_fallthru
          _
      $region12: #{tpu_custom_call.1} parent=5 // pred_fallthru
        _
      %p218 = scmp.lt.s32.totalorder %s19, 2
      // Predicated region
      $region29: #{tpu_custom_call.1} parent=5 // pred_check
        %p219 = pneg %p218
      $region30: #{tpu_custom_call.1} parent=5 // pred_check_branch
        %221 = sbr.rel (%p219) target = $region32
      $region31: #{tpu_custom_call.1} parent=5 // pred_region
        // Predicated region
        $region33: #{tpu_custom_call.1} parent=31 // pred_check
          %p222 = pneg %p39
        $region34: #{tpu_custom_call.1} parent=31 // pred_check_branch
          %224 = sbr.rel (%p222) target = $region36
        $region35: #{tpu_custom_call.1} parent=31 // pred_region
          %s225 = sand.u32 %s29, 1
          %s226 = scalar_lea.sflag [#allocation3], %s225
          %s227 = sand.u32 %s29, 1
          %s228 = smul.addr %s227, 32
          %s229 = scalar_lea.vmem [#allocation2], %s228
          %s230 = smul.u32 4, %s19
          %s232 = ssub.s32 512, 512
          %233 = vsyncadd %s226, %s232
          %s234 = smul.addr %s230, 128
          %s235 = scalar_lea.hbm %s0, %s234
          %s236 = sshll.u32 %s229, 4
          %s237 = int_to_ptr.vmem [resolvable:$true] %s236
          %242 = dma.hbm_to_vmem [thread:$0]  %s235, 512, %s237, %s226, 128, 128, 8
        $region36: #{tpu_custom_call.1} parent=31 // pred_fallthru
          _
      $region32: #{tpu_custom_call.1} parent=5 // pred_fallthru
        _
      %p243 = scmp.le.s32.totalorder 1, %s19
      %p244 = scmp.lt.s32.totalorder %s19, 3
      %p245 = pnand %p243, %p244
      %p246 = pneg %p245
      // Predicated region
      $region37: #{tpu_custom_call.1} parent=5 // pred_check
        _
      $region38: #{tpu_custom_call.1} parent=5 // pred_check_branch
        %248 = sbr.rel (%p245) target = $region40
      $region39: #{tpu_custom_call.1} parent=5 // pred_region
        %s249 = ssub.s32 %s19, 1
        %s250 = sand.u32 %s32, 1
        %s251 = scalar_lea.sflag [#allocation3], %s250
        %s252 = sand.u32 %s32, 1
        %s253 = smul.addr %s252, 32
        %s254 = scalar_lea.vmem [#allocation2], %s253
        // Predicated region
        $region41: #{tpu_custom_call.1} parent=39 // pred_check
          %p255 = pneg %p45
        $region42: #{tpu_custom_call.1} parent=39 // pred_check_branch
          %257 = sbr.rel (%p255) target = $region44
        $region43: #{tpu_custom_call.1} parent=39 // pred_region
          %258 = dma.done %s251, 512
        $region44: #{tpu_custom_call.1} parent=39 // pred_fallthru
          _
        // Predicated region
        $region45: #{tpu_custom_call.1} parent=39 // pred_check
          %p259 = pneg %p66
        $region46: #{tpu_custom_call.1} parent=39 // pred_check_branch
          %261 = sbr.rel (%p259) target = $region48
        $region47: #{tpu_custom_call.1} parent=39 // pred_region
          %262 = dma.done [#allocation6], 2048
        $region48: #{tpu_custom_call.1} parent=39 // pred_fallthru
          _
        // Predicated region
        $region49: #{tpu_custom_call.1} parent=39 // pred_check
          %p263 = pneg %p87
        $region50: #{tpu_custom_call.1} parent=39 // pred_check_branch
          %265 = sbr.rel (%p263) target = $region52
        $region51: #{tpu_custom_call.1} parent=39 // pred_region
          %266 = dma.done [#allocation6], 16
        $region52: #{tpu_custom_call.1} parent=39 // pred_fallthru
          _
        // Predicated region
        $region53: #{tpu_custom_call.1} parent=39 // pred_check
          %p267 = pneg %p108
        $region54: #{tpu_custom_call.1} parent=39 // pred_check_branch
          %269 = sbr.rel (%p267) target = $region56
        $region55: #{tpu_custom_call.1} parent=39 // pred_region
          %270 = dma.done [#allocation9], 2048
        $region56: #{tpu_custom_call.1} parent=39 // pred_fallthru
          _
        // Predicated region
        $region57: #{tpu_custom_call.1} parent=39 // pred_check
          %p271 = pneg %p129
        $region58: #{tpu_custom_call.1} parent=39 // pred_check_branch
          %273 = sbr.rel (%p271) target = $region60
        $region59: #{tpu_custom_call.1} parent=39 // pred_region
          %274 = dma.done [#allocation9], 16
        $region60: #{tpu_custom_call.1} parent=39 // pred_fallthru
          _
        %s275 = sand.u32 %s32, 1
        %s276 = scalar_lea.sflag [#allocation3], %s275
        %s277 = sand.u32 %s32, 1
        %s278 = smul.addr %s277, 32
        %s279 = scalar_lea.vmem [#allocation2], %s278
        %p280 = pneg %p45
        %p281 = pneg %p42
        %p282 = pneg %p66
        %p283 = pneg %p63
        %p284 = pneg %p87
        %p285 = pneg %p84
        %p286 = pneg %p108
        %p287 = pneg %p105
        %p288 = pneg %p129
        %p289 = pneg %p126
        %p290 = pneg %p155
        %p291 = pneg %p152
        %s292 = sand.u32 %s142, 1
        %s293 = scalar_lea.sflag [#allocation4], %s292
        %s294 = sand.u32 %s142, 1
        %s295 = smul.addr %s294, 32
        %s296 = scalar_lea.vmem [#allocation11], %s295
        %s297 = smul.u32 4, %s24
        %s298 = smul.u32 4, %s24
        %v299 = vld [vmem:[%s254] sm:$0xff]
        %v300 = vld [vmem:[%s254 + $0x8] sm:$0xff]
        %v301 = vld [vmem:[%s254 + $0x10] sm:$0xff]
        %v302 = vld [vmem:[%s254 + $0x18] sm:$0xff]
        %v303 = vld [vmem:[#allocation5] sm:$0xff]
        %v304 = vld [vmem:[#allocation5 + $0x8] sm:$0xff]
        %v305 = vld [vmem:[#allocation5 + $0x10] sm:$0xff]
        %v306 = vld [vmem:[#allocation5 + $0x18] sm:$0xff]
        %v307 = vld [vmem:[#allocation5 + $0x20] sm:$0xff]
        %v308 = vld [vmem:[#allocation5 + $0x28] sm:$0xff]
        %v309 = vld [vmem:[#allocation5 + $0x30] sm:$0xff]
        %v310 = vld [vmem:[#allocation5 + $0x38] sm:$0xff]
        %v311 = vld [vmem:[#allocation5 + $0x40] sm:$0xff]
        %v312 = vld [vmem:[#allocation5 + $0x48] sm:$0xff]
        %v313 = vld [vmem:[#allocation5 + $0x50] sm:$0xff]
        %v314 = vld [vmem:[#allocation5 + $0x58] sm:$0xff]
        %v315 = vld [vmem:[#allocation5 + $0x60] sm:$0xff]
        %v316 = vld [vmem:[#allocation5 + $0x68] sm:$0xff]
        %v317 = vld [vmem:[#allocation5 + $0x70] sm:$0xff]
        %v318 = vld [vmem:[#allocation5 + $0x78] sm:$0xff]
        %v319 = vld [vmem:[#allocation7] sm:$0x1]
        %v321 = vlaneseq
        %v322 = vshrl.u32 %v321, 7
        %v323 = vsub.s32 0, %v322
        %v324 = vrot.slane %v319, %v323
        %326 = vmatprep.subr.mxu0 0.0
        %327 = vmatpush1.msra.mxu0 %v303
        %328 = vmatprep.subr.mxu0 0.0
        %329 = vmatpush1.msra.mxu0 %v304
        %330 = vmatprep.subr.mxu0 0.0
        %331 = vmatpush1.msra.mxu0 %v305
        %332 = vmatprep.subr.mxu0 0.0
        %333 = vmatpush1.msra.mxu0 %v306
        %334 = vmatprep.subr.mxu0 0.0
        %335 = vmatpush1.msra.mxu0 %v307
        %336 = vmatprep.subr.mxu0 0.0
        %337 = vmatpush1.msra.mxu0 %v308
        %338 = vmatprep.subr.mxu0 0.0
        %339 = vmatpush1.msra.mxu0 %v309
        %340 = vmatprep.subr.mxu0 0.0
        %341 = vmatpush1.msra.mxu0 %v310
        %342 = vmatprep.subr.mxu0 0.0
        %343 = vmatpush1.msra.mxu0 %v311
        %344 = vmatprep.subr.mxu0 0.0
        %345 = vmatpush1.msra.mxu0 %v312
        %346 = vmatprep.subr.mxu0 0.0
        %347 = vmatpush1.msra.mxu0 %v313
        %348 = vmatprep.subr.mxu0 0.0
        %349 = vmatpush1.msra.mxu0 %v314
        %350 = vmatprep.subr.mxu0 0.0
        %351 = vmatpush1.msra.mxu0 %v315
        %352 = vmatprep.subr.mxu0 0.0
        %353 = vmatpush1.msra.mxu0 %v316
        %354 = vmatprep.subr.mxu0 0.0
        %355 = vmatpush1.msra.mxu0 %v317
        %356 = vmatprep.subr.mxu0 0.0
        %357 = vmatpush1.msra.mxu0 %v318
        %358 = vmatprep.subr.mxu0 0.0
        %359 = vmatpush1.msra.mxu0 0.0
        %360 = vmatprep.subr.mxu0 0.0
        %361 = vmatpush1.msra.mxu0 0.0
        %362 = vmatprep.subr.mxu0 0.0
        %363 = vmatpush1.msra.mxu0 0.0
        %364 = vmatprep.subr.mxu0 0.0
        %365 = vmatpush1.msra.mxu0 0.0
        %366 = vmatprep.subr.mxu0 0.0
        %367 = vmatpush1.msra.mxu0 0.0
        %368 = vmatprep.subr.mxu0 0.0
        %369 = vmatpush1.msra.mxu0 0.0
        %370 = vmatprep.subr.mxu0 0.0
        %371 = vmatpush1.msra.mxu0 0.0
        %372 = vmatprep.subr.mxu0 0.0
        %373 = vmatpush1.msra.mxu0 0.0
        %374 = vmatprep.subr.mxu0 0.0
        %375 = vmatpush1.msra.mxu0 0.0
        %376 = vmatprep.subr.mxu0 0.0
        %377 = vmatpush1.msra.mxu0 0.0
        %378 = vmatprep.subr.mxu0 0.0
        %379 = vmatpush1.msra.mxu0 0.0
        %380 = vmatprep.subr.mxu0 0.0
        %381 = vmatpush1.msra.mxu0 0.0
        %382 = vmatprep.subr.mxu0 0.0
        %383 = vmatpush1.msra.mxu0 0.0
        %384 = vmatprep.subr.mxu0 0.0
        %385 = vmatpush1.msra.mxu0 0.0
        %386 = vmatprep.subr.mxu0 0.0
        %387 = vmatpush1.msra.mxu0 0.0
        %388 = vmatprep.subr.mxu0 0.0
        %389 = vmatpush1.msra.mxu0 0.0
        %390 = vmatprep.mubr.f32.mxu0 0.0
        %391 = vmatmul.mubr.f32.gmra.mrb[0].mxu0 %v299
        %v392 = vpop.f32.mrb[0].mxu0
        %v393 = vadd.f32 %v324, %v392
        %v394 = vpop.f32.mrb[0].mxu0
        %395 = vmatprep.mubr.f32.mxu0 0.0
        %396 = vmatmul.mubr.f32.gmra.mrb[0].mxu0 %v300
        %v397 = vpop.f32.mrb[0].mxu0
        %v398 = vadd.f32 %v324, %v397
        %v399 = vpop.f32.mrb[0].mxu0
        %400 = vmatprep.mubr.f32.mxu0 0.0
        %401 = vmatmul.mubr.f32.gmra.mrb[0].mxu0 %v301
        %v402 = vpop.f32.mrb[0].mxu0
        %v403 = vadd.f32 %v324, %v402
        %v404 = vpop.f32.mrb[0].mxu0
        %405 = vmatprep.mubr.f32.mxu0 0.0
        %406 = vmatmul.mubr.f32.gmra.mrb[0].mxu0 %v302
        %v407 = vpop.f32.mrb[0].mxu0
        %v408 = vadd.f32 %v324, %v407
        %v409 = vpop.f32.mrb[0].mxu0
        %410 = vdwg.mxu0
        %v411 = vmax.f32 %v393, 0.0
        %v412 = vmax.f32 %v398, 0.0
        %v413 = vmax.f32 %v403, 0.0
        %v414 = vmax.f32 %v408, 0.0
        %v415 = vld [vmem:[#allocation8] sm:$0xff]
        %v416 = vld [vmem:[#allocation8 + $0x8] sm:$0xff]
        %v417 = vld [vmem:[#allocation8 + $0x10] sm:$0xff]
        %v418 = vld [vmem:[#allocation8 + $0x18] sm:$0xff]
        %v419 = vld [vmem:[#allocation8 + $0x20] sm:$0xff]
        %v420 = vld [vmem:[#allocation8 + $0x28] sm:$0xff]
        %v421 = vld [vmem:[#allocation8 + $0x30] sm:$0xff]
        %v422 = vld [vmem:[#allocation8 + $0x38] sm:$0xff]
        %v423 = vld [vmem:[#allocation8 + $0x40] sm:$0xff]
        %v424 = vld [vmem:[#allocation8 + $0x48] sm:$0xff]
        %v425 = vld [vmem:[#allocation8 + $0x50] sm:$0xff]
        %v426 = vld [vmem:[#allocation8 + $0x58] sm:$0xff]
        %v427 = vld [vmem:[#allocation8 + $0x60] sm:$0xff]
        %v428 = vld [vmem:[#allocation8 + $0x68] sm:$0xff]
        %v429 = vld [vmem:[#allocation8 + $0x70] sm:$0xff]
        %v430 = vld [vmem:[#allocation8 + $0x78] sm:$0xff]
        %v431 = vld [vmem:[#allocation10] sm:$0x1]
        %v433 = vlaneseq
        %v434 = vshrl.u32 %v433, 7
        %v435 = vsub.s32 0, %v434
        %v436 = vrot.slane %v431, %v435
        %438 = vmatprep.subr.mxu0 0.0
        %439 = vmatpush1.msra.mxu0 %v415
        %440 = vmatprep.subr.mxu0 0.0
        %441 = vmatpush1.msra.mxu0 %v416
        %442 = vmatprep.subr.mxu0 0.0
        %443 = vmatpush1.msra.mxu0 %v417
        %444 = vmatprep.subr.mxu0 0.0
        %445 = vmatpush1.msra.mxu0 %v418
        %446 = vmatprep.subr.mxu0 0.0
        %447 = vmatpush1.msra.mxu0 %v419
        %448 = vmatprep.subr.mxu0 0.0
        %449 = vmatpush1.msra.mxu0 %v420
        %450 = vmatprep.subr.mxu0 0.0
        %451 = vmatpush1.msra.mxu0 %v421
        %452 = vmatprep.subr.mxu0 0.0
        %453 = vmatpush1.msra.mxu0 %v422
        %454 = vmatprep.subr.mxu0 0.0
        %455 = vmatpush1.msra.mxu0 %v423
        %456 = vmatprep.subr.mxu0 0.0
        %457 = vmatpush1.msra.mxu0 %v424
        %458 = vmatprep.subr.mxu0 0.0
        %459 = vmatpush1.msra.mxu0 %v425
        %460 = vmatprep.subr.mxu0 0.0
        %461 = vmatpush1.msra.mxu0 %v426
        %462 = vmatprep.subr.mxu0 0.0
        %463 = vmatpush1.msra.mxu0 %v427
        %464 = vmatprep.subr.mxu0 0.0
        %465 = vmatpush1.msra.mxu0 %v428
        %466 = vmatprep.subr.mxu0 0.0
        %467 = vmatpush1.msra.mxu0 %v429
        %468 = vmatprep.subr.mxu0 0.0
        %469 = vmatpush1.msra.mxu0 %v430
        %470 = vmatprep.subr.mxu0 0.0
        %471 = vmatpush1.msra.mxu0 0.0
        %472 = vmatprep.subr.mxu0 0.0
        %473 = vmatpush1.msra.mxu0 0.0
        %474 = vmatprep.subr.mxu0 0.0
        %475 = vmatpush1.msra.mxu0 0.0
        %476 = vmatprep.subr.mxu0 0.0
        %477 = vmatpush1.msra.mxu0 0.0
        %478 = vmatprep.subr.mxu0 0.0
        %479 = vmatpush1.msra.mxu0 0.0
        %480 = vmatprep.subr.mxu0 0.0
        %481 = vmatpush1.msra.mxu0 0.0
        %482 = vmatprep.subr.mxu0 0.0
        %483 = vmatpush1.msra.mxu0 0.0
        %484 = vmatprep.subr.mxu0 0.0
        %485 = vmatpush1.msra.mxu0 0.0
        %486 = vmatprep.subr.mxu0 0.0
        %487 = vmatpush1.msra.mxu0 0.0
        %488 = vmatprep.subr.mxu0 0.0
        %489 = vmatpush1.msra.mxu0 0.0
        %490 = vmatprep.subr.mxu0 0.0
        %491 = vmatpush1.msra.mxu0 0.0
        %492 = vmatprep.subr.mxu0 0.0
        %493 = vmatpush1.msra.mxu0 0.0
        %494 = vmatprep.subr.mxu0 0.0
        %495 = vmatpush1.msra.mxu0 0.0
        %496 = vmatprep.subr.mxu0 0.0
        %497 = vmatpush1.msra.mxu0 0.0
        %498 = vmatprep.subr.mxu0 0.0
        %499 = vmatpush1.msra.mxu0 0.0
        %500 = vmatprep.subr.mxu0 0.0
        %501 = vmatpush1.msra.mxu0 0.0
        %502 = vmatprep.mubr.f32.mxu0 0.0
        %503 = vmatmul.mubr.f32.gmra.mrb[0].mxu0 %v411
        %v504 = vpop.f32.mrb[0].mxu0
        %v505 = vadd.f32 %v436, %v504
        %v506 = vpop.f32.mrb[0].mxu0
        %507 = vmatprep.mubr.f32.mxu0 0.0
        %508 = vmatmul.mubr.f32.gmra.mrb[0].mxu0 %v412
        %v509 = vpop.f32.mrb[0].mxu0
        %v510 = vadd.f32 %v436, %v509
        %v511 = vpop.f32.mrb[0].mxu0
        %512 = vmatprep.mubr.f32.mxu0 0.0
        %513 = vmatmul.mubr.f32.gmra.mrb[0].mxu0 %v413
        %v514 = vpop.f32.mrb[0].mxu0
        %v515 = vadd.f32 %v436, %v514
        %v516 = vpop.f32.mrb[0].mxu0
        %517 = vmatprep.mubr.f32.mxu0 0.0
        %518 = vmatmul.mubr.f32.gmra.mrb[0].mxu0 %v414
        %v519 = vpop.f32.mrb[0].mxu0
        %v520 = vadd.f32 %v436, %v519
        %v521 = vpop.f32.mrb[0].mxu0
        %522 = vdwg.mxu0
        %v523 = vmax.f32 %v505, 0.0
        %v524 = vmax.f32 %v510, 0.0
        %v525 = vmax.f32 %v515, 0.0
        %v526 = vmax.f32 %v520, 0.0
        %527 = vst [vmem:[%s296] sm:$0xff] %v523
        %528 = vst [vmem:[%s296 + $0x8] sm:$0xff] %v524
        %529 = vst [vmem:[%s296 + $0x10] sm:$0xff] %v525
        %530 = vst [vmem:[%s296 + $0x18] sm:$0xff] %v526
        %s531 = sand.u32 %s142, 1
        %s532 = scalar_lea.sflag [#allocation4], %s531
        %s533 = sand.u32 %s142, 1
        %s534 = smul.addr %s533, 32
        %s535 = scalar_lea.vmem [#allocation11], %s534
        // Predicated region
        $region61: #{tpu_custom_call.1} parent=39 // pred_check
          %p536 = pneg %p152
        $region62: #{tpu_custom_call.1} parent=39 // pred_check_branch
          %538 = sbr.rel (%p536) target = $region64
        $region63: #{tpu_custom_call.1} parent=39 // pred_region
          %s539 = smul.u32 4, %s24
          %s541 = ssub.s32 512, 512
          %542 = vsyncadd %s532, %s541
          %s543 = smul.addr %s539, 128
          %s544 = scalar_lea.hbm %s5, %s543
          %s545 = sshll.u32 %s535, 4
          %s546 = int_to_ptr.vmem [resolvable:$true] %s545
          %551 = dma.vmem_to_hbm [thread:$0]  %s546, 512, %s544, %s532, 128, 128, 8
        $region64: #{tpu_custom_call.1} parent=39 // pred_fallthru
          _
      $region40: #{tpu_custom_call.1} parent=5 // pred_fallthru
        _
      %p552 = scmp.le.s32.totalorder 2, %s19
      // Predicated region
      $region65: #{tpu_custom_call.1} parent=5 // pred_check
        %p553 = pneg %p552
      $region66: #{tpu_custom_call.1} parent=5 // pred_check_branch
        %555 = sbr.rel (%p553) target = $region68
      $region67: #{tpu_custom_call.1} parent=5 // pred_region
        %s556 = ssub.s32 %s19, 2
        // Predicated region
        $region69: #{tpu_custom_call.1} parent=67 // pred_check
          %p557 = pneg %p158
        $region70: #{tpu_custom_call.1} parent=67 // pred_check_branch
          %559 = sbr.rel (%p557) target = $region72
        $region71: #{tpu_custom_call.1} parent=67 // pred_region
          %s560 = sand.u32 %s143, 1
          %s561 = scalar_lea.sflag [#allocation4], %s560
          %s562 = sand.u32 %s143, 1
          %s563 = smul.addr %s562, 32
          %s564 = scalar_lea.vmem [#allocation11], %s563
          %565 = dma.done %s561, 512
        $region72: #{tpu_custom_call.1} parent=67 // pred_fallthru
          _
      $region68: #{tpu_custom_call.1} parent=5 // pred_fallthru
        _
    $region6: #{tpu_custom_call.1} parent=1 // loop_footer
      %s23 = sadd.s32 1, %s19
    $region7: #{tpu_custom_call.1} parent=1 // loop_footer_branch
      %18 = sbr.rel target = $region3
    $region8: #{tpu_custom_call.1} parent=1 // loop_exit
      _
    %566 = vsyncpa [#allocation3], 1
    %s567 = scalar_lea.sflag [#allocation3], 1
    %568 = vsyncpa %s567, 1
    %569 = vsyncpa [#allocation6], 1
    %570 = vsyncpa [#allocation9], 1
    %571 = vsyncpa [#allocation4], 1
    %s572 = scalar_lea.sflag [#allocation4], 1
    %573 = vsyncpa %s572, 1

</llo_original>
